<compile_context>
chip_gen: v7x
topology: tpu7x:2x2x1
jax: 0.10.0
libtpu: 0.0.40
codegen_flags: <defaults>
</compile_context>

<pallas_src>
import functools

import jax
import jax.numpy as jnp
from jax.experimental import pallas as pl
from jax.experimental.pallas import tpu as pltpu


def _vmem_spec():
    # Tiny problem: all operands fit comfortably in VMEM; no grid / tiling.
    return pl.BlockSpec(memory_space=pltpu.MemorySpace.VMEM)


# ---------------------------------------------------------------------------
# Fused Pallas kernel: whole decoder forward in one invocation
# ---------------------------------------------------------------------------
def decoder_kernel(a_ref, xc_ref, w0_ref, b0_ref, wxa_ref, bxa_ref, wha_ref,
                   out_ref, hn_ref, cn_ref, *, seq_len, hidden, out_ch):
    """Fused GConvLSTM Decoder.

    a_ref   : [N, N]               normalized dense adjacency A_hat
    xc_ref  : [N, 2H]              concat([x, c], lanes)
    w0_ref  : [2H, 2O]             blockdiag(W_conv_h, W_conv_c)
    b0_ref  : [1, 2O]              concat([b_conv_h, b_conv_c])
    wxa_ref : [H, seq_len*4O]      concat_i(Wx_i)   (x half of each cell conv)
    bxa_ref : [1, seq_len*4O]      concat_i(b_i)
    wha_ref : [O, seq_len*4O]      concat_i(Wh_i)   (h half of each cell conv)
    out_ref : [N, seq_len*O]       per-step h, lane slab
    hn_ref  : [N, O]               final h
    cn_ref  : [N, O]               final c
    """
    a = a_ref[...]
    xc = xc_ref[...]

    # Initial states: one block-diagonal GCNConv -> [h0 | c0].
    hc0 = jnp.dot(a,
                  jnp.dot(xc, w0_ref[...], preferred_element_type=jnp.float32),
                  preferred_element_type=jnp.float32) + b0_ref[...]
    h = hc0[:, :out_ch]
    c = hc0[:, out_ch:]

    # x-dependent gate pre-activations for EVERY timestep in one lane-dense
    # matmul (exploits linearity of A_hat@ and that x is loop-invariant).
    x = xc[:, :hidden]
    px = jnp.dot(a,
                 jnp.dot(x, wxa_ref[...], preferred_element_type=jnp.float32),
                 preferred_element_type=jnp.float32) + bxa_ref[...]

    go = 4 * out_ch
    for i in range(seq_len):                      # static unroll (small seq)
        wh = wha_ref[:, i * go:(i + 1) * go]      # [O, 4O], static lane slice
        conv = px[:, i * go:(i + 1) * go] + jnp.dot(
            a, jnp.dot(h, wh, preferred_element_type=jnp.float32),
            preferred_element_type=jnp.float32)

        # Gate order matches the reference torch.split: f, i, o, g.
        # (sub-128-lane slices: negligible vs. the serial MXU chain here)
        cc_f = conv[:, 0 * out_ch:1 * out_ch]
        cc_i = conv[:, 1 * out_ch:2 * out_ch]
        cc_o = conv[:, 2 * out_ch:3 * out_ch]
        cc_g = conv[:, 3 * out_ch:4 * out_ch]

        f_g = jax.nn.sigmoid(cc_f)
        i_g = jax.nn.sigmoid(cc_i)
        o_g = jax.nn.sigmoid(cc_o)
        g_g = jnp.tanh(cc_g)

        c = f_g * c + i_g * g_g
        h = o_g * jnp.tanh(c)

        # Per-step h into the lane slab at a static offset.
        out_ref[:, i * out_ch:(i + 1) * out_ch] = h

    hn_ref[...] = h
    cn_ref[...] = c


def fused_decoder(a_hat, x, c, w0, b0, wx_all, bx_all, wh_all,
                  seq_len, hidden, out_ch):
    n = x.shape[0]
    xc = jnp.concatenate([x, c], axis=1)          # [N, 2H]
    kern = functools.partial(decoder_kernel, seq_len=seq_len,
                             hidden=hidden, out_ch=out_ch)
    out_slab, h_last, c_last = pl.pallas_call(
        kern,
        out_shape=(jax.ShapeDtypeStruct((n, seq_len * out_ch), jnp.float32),
                   jax.ShapeDtypeStruct((n, out_ch), jnp.float32),
                   jax.ShapeDtypeStruct((n, out_ch), jnp.float32)),
        in_specs=[_vmem_spec()] * 7,
        out_specs=(_vmem_spec(), _vmem_spec(), _vmem_spec()),
    )(a_hat, xc, w0, b0, wx_all, bx_all, wh_all)
    # [N, seq_len*O] -> [seq_len, N, O]  (matches torch.stack(..., dim=0))
    output = out_slab.reshape(n, seq_len, out_ch).transpose(1, 0, 2)
    return output, (h_last, c_last)


# ---------------------------------------------------------------------------
# Glue: GCN symmetric normalization (dense), parameter init, jitted forward
# ---------------------------------------------------------------------------
def gcn_norm_dense(edge_index, edge_weight, num_nodes):
    """Dense equivalent of PyG gcn_norm with add_self_loops=True."""
    src = edge_index[0]
    dst = edge_index[1]
    if edge_weight is None:
        edge_weight = jnp.ones(src.shape[0], dtype=jnp.float32)
    loop = jnp.arange(num_nodes, dtype=src.dtype)
    src = jnp.concatenate([src, loop])
    dst = jnp.concatenate([dst, loop])
    w = jnp.concatenate([edge_weight, jnp.ones(num_nodes, dtype=jnp.float32)])

    deg = jnp.zeros(num_nodes, dtype=jnp.float32).at[dst].add(w)
    dinv = jnp.where(deg > 0, 1.0 / jnp.sqrt(deg), 0.0)
    norm = dinv[src] * w * dinv[dst]

    a_hat = jnp.zeros((num_nodes, num_nodes), dtype=jnp.float32)
    a_hat = a_hat.at[dst, src].add(norm)          # out = A_hat @ (X W)
    return a_hat


def glorot(key, shape):
    fan_in, fan_out = shape
    lim = jnp.sqrt(6.0 / (fan_in + fan_out))
    return jax.random.uniform(key, shape, jnp.float32, -lim, lim)


def init_decoder_params(key, seq_len, hidden_channels, output_channels):
    keys = jax.random.split(key, 2 + seq_len)
    params = {
        # conv_h / conv_c: GCNConv(hidden, output)
        "w_h": glorot(keys[0], (hidden_channels, output_channels)),
        "b_h": jnp.zeros((output_channels,), jnp.float32),
        "w_c": glorot(keys[1], (hidden_channels, output_channels)),
        "b_c": jnp.zeros((output_channels,), jnp.float32),
        "cells": [],
    }
    for i in range(seq_len):
        # GConvLSTMCell conv: GCNConv(hidden + output, 4 * output);
        # combined = cat([x, h]) so rows [:hidden] act on x, [hidden:] on h.
        w = glorot(keys[2 + i],
                   (hidden_channels + output_channels, 4 * output_channels))
        b = jnp.zeros((4 * output_channels,), jnp.float32)
        params["cells"].append((w, b))
    return params


@functools.partial(jax.jit, static_argnames=("seq_len", "output_channels"))
def decoder_forward(params, x, c, edge_index, edge_weight, *,
                    seq_len, output_channels):
    n, hidden = x.shape
    out_ch = output_channels

    a_hat = gcn_norm_dense(edge_index, edge_weight, n)

    # Fuse conv_h / conv_c into one block-diagonal weight.
    w0 = jnp.zeros((2 * hidden, 2 * out_ch), jnp.float32)
    w0 = w0.at[:hidden, :out_ch].set(params["w_h"])
    w0 = w0.at[hidden:, out_ch:].set(params["w_c"])
    b0 = jnp.concatenate([params["b_h"], params["b_c"]]).reshape(1, 2 * out_ch)

    # Pack all cells: x-half weights + biases lane-concatenated, h-half too.
    wx_all = jnp.concatenate([w[:hidden] for (w, _) in params["cells"]],
                             axis=1)                       # [H, S*4O]
    bx_all = jnp.concatenate([b for (_, b) in params["cells"]]
                             ).reshape(1, seq_len * 4 * out_ch)
    wh_all = jnp.concatenate([w[hidden:] for (w, _) in params["cells"]],
                             axis=1)                       # [O, S*4O]

    return fused_decoder(a_hat, x, c, w0, b0, wx_all, bx_all, wh_all,
                         seq_len, hidden, out_ch)


# ---------------------------------------------------------------------------
if __name__ == "__main__":
    seq_len = 4
    hidden_channels = 32
    output_channels = 16
    num_nodes = 16
    num_edges = 48

    key = jax.random.PRNGKey(0)
    k_param, k_x, k_c, k_e, k_w = jax.random.split(key, 5)

    params = init_decoder_params(k_param, seq_len, hidden_channels,
                                 output_channels)

    x = jax.random.normal(k_x, (num_nodes, hidden_channels), jnp.float32)
    c = jax.random.normal(k_c, (num_nodes, hidden_channels), jnp.float32)
    edge_index = jax.random.randint(k_e, (2, num_edges), 0, num_nodes,
                                    dtype=jnp.int32)
    edge_weight = jax.random.uniform(k_w, (num_edges,), jnp.float32, 0.5, 1.5)

    output, (h_last, c_last) = decoder_forward(
        params, x, c, edge_index, edge_weight,
        seq_len=seq_len, output_channels=output_channels)

    jax.block_until_ready(output)
    jax.block_until_ready(h_last)
    jax.block_until_ready(c_last)

    assert output.shape == (seq_len, num_nodes, output_channels)
    assert h_last.shape == (num_nodes, output_channels)
    assert c_last.shape == (num_nodes, output_channels)
    assert bool(jnp.all(jnp.isfinite(output)))
    print("KERNEL_OK")
</pallas_src>

<mosaic_0001>
module attributes {stable_mosaic.version = 11 : i64} {
  func.func private @main(%arg0: i32) attributes {dimension_semantics = [#tpu.dimension_semantics<core_parallel>], iteration_bounds = array<i64: 2>, tpu.core_type = #tpu.core_type<sc_scalar_subcore>, window_params = []} {
    return
  }
}

module attributes {stable_mosaic.version = 11 : i64} {
  func.func private @main(%arg0: i32) attributes {dimension_semantics = [#tpu.dimension_semantics<core_parallel>], iteration_bounds = array<i64: 2>, tpu.core_type = #tpu.core_type<sc_scalar_subcore>, window_params = []} {
    return
  }
}

module attributes {stable_mosaic.version = 11 : i64} {
  func.func @decoder_kernel(%arg0: memref<16x16xf32, #tpu.memory_space<vmem>>, %arg1: memref<16x64xf32, #tpu.memory_space<vmem>>, %arg2: memref<64x32xf32, #tpu.memory_space<vmem>>, %arg3: memref<1x32xf32, #tpu.memory_space<vmem>>, %arg4: memref<32x256xf32, #tpu.memory_space<vmem>>, %arg5: memref<1x256xf32, #tpu.memory_space<vmem>>, %arg6: memref<16x256xf32, #tpu.memory_space<vmem>>, %arg7: memref<16x64xf32, #tpu.memory_space<vmem>>, %arg8: memref<16x16xf32, #tpu.memory_space<vmem>>, %arg9: memref<16x16xf32, #tpu.memory_space<vmem>>) attributes {dimension_semantics = [], scalar_prefetch = 0 : i64, scratch_operands = 0 : i64, tpu.core_type = #tpu.core_type<tc>} {
    %c0 = arith.constant 0 : index
    %c0_0 = arith.constant 0 : index
    %0 = vector.load %arg0[%c0, %c0_0] : memref<16x16xf32, #tpu.memory_space<vmem>>, vector<16x16xf32>
    %c0_1 = arith.constant 0 : index
    %c0_2 = arith.constant 0 : index
    %1 = vector.load %arg1[%c0_1, %c0_2] : memref<16x64xf32, #tpu.memory_space<vmem>>, vector<16x64xf32>
    %c0_3 = arith.constant 0 : index
    %c0_4 = arith.constant 0 : index
    %2 = vector.load %arg2[%c0_3, %c0_4] : memref<64x32xf32, #tpu.memory_space<vmem>>, vector<64x32xf32>
    %cst = arith.constant dense<0.000000e+00> : vector<16x32xf32>
    %3 = tpu.matmul %1, %2, %cst {dimension_numbers = #tpu.dot_dimension_numbers<[1], [0], [0], [1], [0, 0, 1, 1], [], []>} : vector<16x64xf32>, vector<64x32xf32>, vector<16x32xf32> -> vector<16x32xf32>
    %cst_5 = arith.constant dense<0.000000e+00> : vector<16x32xf32>
    %4 = tpu.matmul %0, %3, %cst_5 {dimension_numbers = #tpu.dot_dimension_numbers<[1], [0], [0], [1], [0, 0, 1, 1], [], []>} : vector<16x16xf32>, vector<16x32xf32>, vector<16x32xf32> -> vector<16x32xf32>
    %c0_6 = arith.constant 0 : index
    %c0_7 = arith.constant 0 : index
    %5 = vector.load %arg3[%c0_6, %c0_7] : memref<1x32xf32, #tpu.memory_space<vmem>>, vector<1x32xf32>
    %6 = vector.broadcast %5 : vector<1x32xf32> to vector<16x32xf32>
    %7 = arith.addf %4, %6 : vector<16x32xf32>
    %8 = vector.extract_strided_slice %7 {offsets = [0, 0], sizes = [16, 16], strides = [1, 1]} : vector<16x32xf32> to vector<16x16xf32>
    %9 = vector.extract_strided_slice %7 {offsets = [0, 16], sizes = [16, 16], strides = [1, 1]} : vector<16x32xf32> to vector<16x16xf32>
    %10 = vector.extract_strided_slice %1 {offsets = [0, 0], sizes = [16, 32], strides = [1, 1]} : vector<16x64xf32> to vector<16x32xf32>
    %c0_8 = arith.constant 0 : index
    %c0_9 = arith.constant 0 : index
    %11 = vector.load %arg4[%c0_8, %c0_9] : memref<32x256xf32, #tpu.memory_space<vmem>>, vector<32x256xf32>
    %cst_10 = arith.constant dense<0.000000e+00> : vector<16x256xf32>
    %12 = tpu.matmul %10, %11, %cst_10 {dimension_numbers = #tpu.dot_dimension_numbers<[1], [0], [0], [1], [0, 0, 1, 1], [], []>} : vector<16x32xf32>, vector<32x256xf32>, vector<16x256xf32> -> vector<16x256xf32>
    %cst_11 = arith.constant dense<0.000000e+00> : vector<16x256xf32>
    %13 = tpu.matmul %0, %12, %cst_11 {dimension_numbers = #tpu.dot_dimension_numbers<[1], [0], [0], [1], [0, 0, 1, 1], [], []>} : vector<16x16xf32>, vector<16x256xf32>, vector<16x256xf32> -> vector<16x256xf32>
    %c0_12 = arith.constant 0 : index
    %c0_13 = arith.constant 0 : index
    %14 = vector.load %arg5[%c0_12, %c0_13] : memref<1x256xf32, #tpu.memory_space<vmem>>, vector<1x256xf32>
    %15 = vector.broadcast %14 : vector<1x256xf32> to vector<16x256xf32>
    %16 = arith.addf %13, %15 : vector<16x256xf32>
    %c0_14 = arith.constant 0 : index
    %c0_15 = arith.constant 0 : index
    %17 = vector.load %arg6[%c0_14, %c0_15] : memref<16x256xf32, #tpu.memory_space<vmem>>, vector<16x64xf32>
    %18 = vector.extract_strided_slice %16 {offsets = [0, 0], sizes = [16, 64], strides = [1, 1]} : vector<16x256xf32> to vector<16x64xf32>
    %cst_16 = arith.constant dense<0.000000e+00> : vector<16x64xf32>
    %19 = tpu.matmul %8, %17, %cst_16 {dimension_numbers = #tpu.dot_dimension_numbers<[1], [0], [0], [1], [0, 0, 1, 1], [], []>} : vector<16x16xf32>, vector<16x64xf32>, vector<16x64xf32> -> vector<16x64xf32>
    %cst_17 = arith.constant dense<0.000000e+00> : vector<16x64xf32>
    %20 = tpu.matmul %0, %19, %cst_17 {dimension_numbers = #tpu.dot_dimension_numbers<[1], [0], [0], [1], [0, 0, 1, 1], [], []>} : vector<16x16xf32>, vector<16x64xf32>, vector<16x64xf32> -> vector<16x64xf32>
    %21 = arith.addf %18, %20 : vector<16x64xf32>
    %22 = vector.extract_strided_slice %21 {offsets = [0, 0], sizes = [16, 16], strides = [1, 1]} : vector<16x64xf32> to vector<16x16xf32>
    %23 = vector.extract_strided_slice %21 {offsets = [0, 16], sizes = [16, 16], strides = [1, 1]} : vector<16x64xf32> to vector<16x16xf32>
    %24 = vector.extract_strided_slice %21 {offsets = [0, 32], sizes = [16, 16], strides = [1, 1]} : vector<16x64xf32> to vector<16x16xf32>
    %25 = vector.extract_strided_slice %21 {offsets = [0, 48], sizes = [16, 16], strides = [1, 1]} : vector<16x64xf32> to vector<16x16xf32>
    %26 = arith.negf %22 : vector<16x16xf32>
    %27 = math.exp %26 : vector<16x16xf32>
    %cst_18 = arith.constant 1.000000e+00 : f32
    %28 = vector.broadcast %cst_18 : f32 to vector<16x16xf32>
    %29 = arith.addf %28, %27 : vector<16x16xf32>
    %30 = arith.divf %28, %29 : vector<16x16xf32>
    %31 = arith.negf %23 : vector<16x16xf32>
    %32 = math.exp %31 : vector<16x16xf32>
    %cst_19 = arith.constant 1.000000e+00 : f32
    %33 = vector.broadcast %cst_19 : f32 to vector<16x16xf32>
    %34 = arith.addf %33, %32 : vector<16x16xf32>
    %35 = arith.divf %33, %34 : vector<16x16xf32>
    %36 = arith.negf %24 : vector<16x16xf32>
    %37 = math.exp %36 : vector<16x16xf32>
    %cst_20 = arith.constant 1.000000e+00 : f32
    %38 = vector.broadcast %cst_20 : f32 to vector<16x16xf32>
    %39 = arith.addf %38, %37 : vector<16x16xf32>
    %40 = arith.divf %38, %39 : vector<16x16xf32>
    %41 = math.tanh %25 : vector<16x16xf32>
    %42 = arith.mulf %30, %9 : vector<16x16xf32>
    %43 = arith.mulf %35, %41 : vector<16x16xf32>
    %44 = arith.addf %42, %43 : vector<16x16xf32>
    %45 = math.tanh %44 : vector<16x16xf32>
    %46 = arith.mulf %40, %45 : vector<16x16xf32>
    %c0_21 = arith.constant 0 : index
    %c0_22 = arith.constant 0 : index
    %47 = vector.load %arg7[%c0_21, %c0_22] : memref<16x64xf32, #tpu.memory_space<vmem>>, vector<16x16xf32>
    tpu.vector_store %arg7[%c0_21, %c0_22], %46 {strides = array<i32>} : memref<16x64xf32, #tpu.memory_space<vmem>>, vector<16x16xf32>,
    %c0_23 = arith.constant 0 : index
    %c64 = arith.constant 64 : index
    %48 = vector.load %arg6[%c0_23, %c64] : memref<16x256xf32, #tpu.memory_space<vmem>>, vector<16x64xf32>
    %49 = vector.extract_strided_slice %16 {offsets = [0, 64], sizes = [16, 64], strides = [1, 1]} : vector<16x256xf32> to vector<16x64xf32>
    %cst_24 = arith.constant dense<0.000000e+00> : vector<16x64xf32>
    %50 = tpu.matmul %46, %48, %cst_24 {dimension_numbers = #tpu.dot_dimension_numbers<[1], [0], [0], [1], [0, 0, 1, 1], [], []>} : vector<16x16xf32>, vector<16x64xf32>, vector<16x64xf32> -> vector<16x64xf32>
    %cst_25 = arith.constant dense<0.000000e+00> : vector<16x64xf32>
    %51 = tpu.matmul %0, %50, %cst_25 {dimension_numbers = #tpu.dot_dimension_numbers<[1], [0], [0], [1], [0, 0, 1, 1], [], []>} : vector<16x16xf32>, vector<16x64xf32>, vector<16x64xf32> -> vector<16x64xf32>
    %52 = arith.addf %49, %51 : vector<16x64xf32>
    %53 = vector.extract_strided_slice %52 {offsets = [0, 0], sizes = [16, 16], strides = [1, 1]} : vector<16x64xf32> to vector<16x16xf32>
    %54 = vector.extract_strided_slice %52 {offsets = [0, 16], sizes = [16, 16], strides = [1, 1]} : vector<16x64xf32> to vector<16x16xf32>
    %55 = vector.extract_strided_slice %52 {offsets = [0, 32], sizes = [16, 16], strides = [1, 1]} : vector<16x64xf32> to vector<16x16xf32>
    %56 = vector.extract_strided_slice %52 {offsets = [0, 48], sizes = [16, 16], strides = [1, 1]} : vector<16x64xf32> to vector<16x16xf32>
    %57 = arith.negf %53 : vector<16x16xf32>
    %58 = math.exp %57 : vector<16x16xf32>
    %cst_26 = arith.constant 1.000000e+00 : f32
    %59 = vector.broadcast %cst_26 : f32 to vector<16x16xf32>
    %60 = arith.addf %59, %58 : vector<16x16xf32>
    %61 = arith.divf %59, %60 : vector<16x16xf32>
    %62 = arith.negf %54 : vector<16x16xf32>
    %63 = math.exp %62 : vector<16x16xf32>
    %cst_27 = arith.constant 1.000000e+00 : f32
    %64 = vector.broadcast %cst_27 : f32 to vector<16x16xf32>
    %65 = arith.addf %64, %63 : vector<16x16xf32>
    %66 = arith.divf %64, %65 : vector<16x16xf32>
    %67 = arith.negf %55 : vector<16x16xf32>
    %68 = math.exp %67 : vector<16x16xf32>
    %cst_28 = arith.constant 1.000000e+00 : f32
    %69 = vector.broadcast %cst_28 : f32 to vector<16x16xf32>
    %70 = arith.addf %69, %68 : vector<16x16xf32>
    %71 = arith.divf %69, %70 : vector<16x16xf32>
    %72 = math.tanh %56 : vector<16x16xf32>
    %73 = arith.mulf %61, %44 : vector<16x16xf32>
    %74 = arith.mulf %66, %72 : vector<16x16xf32>
    %75 = arith.addf %73, %74 : vector<16x16xf32>
    %76 = math.tanh %75 : vector<16x16xf32>
    %77 = arith.mulf %71, %76 : vector<16x16xf32>
    %c0_29 = arith.constant 0 : index
    %c16 = arith.constant 16 : index
    %78 = vector.load %arg7[%c0_29, %c16] : memref<16x64xf32, #tpu.memory_space<vmem>>, vector<16x16xf32>
    tpu.vector_store %arg7[%c0_29, %c16], %77 {strides = array<i32>} : memref<16x64xf32, #tpu.memory_space<vmem>>, vector<16x16xf32>,
    %c0_30 = arith.constant 0 : index
    %c128 = arith.constant 128 : index
    %79 = vector.load %arg6[%c0_30, %c128] : memref<16x256xf32, #tpu.memory_space<vmem>>, vector<16x64xf32>
    %80 = vector.extract_strided_slice %16 {offsets = [0, 128], sizes = [16, 64], strides = [1, 1]} : vector<16x256xf32> to vector<16x64xf32>
    %cst_31 = arith.constant dense<0.000000e+00> : vector<16x64xf32>
    %81 = tpu.matmul %77, %79, %cst_31 {dimension_numbers = #tpu.dot_dimension_numbers<[1], [0], [0], [1], [0, 0, 1, 1], [], []>} : vector<16x16xf32>, vector<16x64xf32>, vector<16x64xf32> -> vector<16x64xf32>
    %cst_32 = arith.constant dense<0.000000e+00> : vector<16x64xf32>
    %82 = tpu.matmul %0, %81, %cst_32 {dimension_numbers = #tpu.dot_dimension_numbers<[1], [0], [0], [1], [0, 0, 1, 1], [], []>} : vector<16x16xf32>, vector<16x64xf32>, vector<16x64xf32> -> vector<16x64xf32>
    %83 = arith.addf %80, %82 : vector<16x64xf32>
    %84 = vector.extract_strided_slice %83 {offsets = [0, 0], sizes = [16, 16], strides = [1, 1]} : vector<16x64xf32> to vector<16x16xf32>
    %85 = vector.extract_strided_slice %83 {offsets = [0, 16], sizes = [16, 16], strides = [1, 1]} : vector<16x64xf32> to vector<16x16xf32>
    %86 = vector.extract_strided_slice %83 {offsets = [0, 32], sizes = [16, 16], strides = [1, 1]} : vector<16x64xf32> to vector<16x16xf32>
    %87 = vector.extract_strided_slice %83 {offsets = [0, 48], sizes = [16, 16], strides = [1, 1]} : vector<16x64xf32> to vector<16x16xf32>
    %88 = arith.negf %84 : vector<16x16xf32>
    %89 = math.exp %88 : vector<16x16xf32>
    %cst_33 = arith.constant 1.000000e+00 : f32
    %90 = vector.broadcast %cst_33 : f32 to vector<16x16xf32>
    %91 = arith.addf %90, %89 : vector<16x16xf32>
    %92 = arith.divf %90, %91 : vector<16x16xf32>
    %93 = arith.negf %85 : vector<16x16xf32>
    %94 = math.exp %93 : vector<16x16xf32>
    %cst_34 = arith.constant 1.000000e+00 : f32
    %95 = vector.broadcast %cst_34 : f32 to vector<16x16xf32>
    %96 = arith.addf %95, %94 : vector<16x16xf32>
    %97 = arith.divf %95, %96 : vector<16x16xf32>
    %98 = arith.negf %86 : vector<16x16xf32>
    %99 = math.exp %98 : vector<16x16xf32>
    %cst_35 = arith.constant 1.000000e+00 : f32
    %100 = vector.broadcast %cst_35 : f32 to vector<16x16xf32>
    %101 = arith.addf %100, %99 : vector<16x16xf32>
    %102 = arith.divf %100, %101 : vector<16x16xf32>
    %103 = math.tanh %87 : vector<16x16xf32>
    %104 = arith.mulf %92, %75 : vector<16x16xf32>
    %105 = arith.mulf %97, %103 : vector<16x16xf32>
    %106 = arith.addf %104, %105 : vector<16x16xf32>
    %107 = math.tanh %106 : vector<16x16xf32>
    %108 = arith.mulf %102, %107 : vector<16x16xf32>
    %c0_36 = arith.constant 0 : index
    %c32 = arith.constant 32 : index
    %109 = vector.load %arg7[%c0_36, %c32] : memref<16x64xf32, #tpu.memory_space<vmem>>, vector<16x16xf32>
    tpu.vector_store %arg7[%c0_36, %c32], %108 {strides = array<i32>} : memref<16x64xf32, #tpu.memory_space<vmem>>, vector<16x16xf32>,
    %c0_37 = arith.constant 0 : index
    %c192 = arith.constant 192 : index
    %110 = vector.load %arg6[%c0_37, %c192] : memref<16x256xf32, #tpu.memory_space<vmem>>, vector<16x64xf32>
    %111 = vector.extract_strided_slice %16 {offsets = [0, 192], sizes = [16, 64], strides = [1, 1]} : vector<16x256xf32> to vector<16x64xf32>
    %cst_38 = arith.constant dense<0.000000e+00> : vector<16x64xf32>
    %112 = tpu.matmul %108, %110, %cst_38 {dimension_numbers = #tpu.dot_dimension_numbers<[1], [0], [0], [1], [0, 0, 1, 1], [], []>} : vector<16x16xf32>, vector<16x64xf32>, vector<16x64xf32> -> vector<16x64xf32>
    %cst_39 = arith.constant dense<0.000000e+00> : vector<16x64xf32>
    %113 = tpu.matmul %0, %112, %cst_39 {dimension_numbers = #tpu.dot_dimension_numbers<[1], [0], [0], [1], [0, 0, 1, 1], [], []>} : vector<16x16xf32>, vector<16x64xf32>, vector<16x64xf32> -> vector<16x64xf32>
    %114 = arith.addf %111, %113 : vector<16x64xf32>
    %115 = vector.extract_strided_slice %114 {offsets = [0, 0], sizes = [16, 16], strides = [1, 1]} : vector<16x64xf32> to vector<16x16xf32>
    %116 = vector.extract_strided_slice %114 {offsets = [0, 16], sizes = [16, 16], strides = [1, 1]} : vector<16x64xf32> to vector<16x16xf32>
    %117 = vector.extract_strided_slice %114 {offsets = [0, 32], sizes = [16, 16], strides = [1, 1]} : vector<16x64xf32> to vector<16x16xf32>
    %118 = vector.extract_strided_slice %114 {offsets = [0, 48], sizes = [16, 16], strides = [1, 1]} : vector<16x64xf32> to vector<16x16xf32>
    %119 = arith.negf %115 : vector<16x16xf32>
    %120 = math.exp %119 : vector<16x16xf32>
    %cst_40 = arith.constant 1.000000e+00 : f32
    %121 = vector.broadcast %cst_40 : f32 to vector<16x16xf32>
    %122 = arith.addf %121, %120 : vector<16x16xf32>
    %123 = arith.divf %121, %122 : vector<16x16xf32>
    %124 = arith.negf %116 : vector<16x16xf32>
    %125 = math.exp %124 : vector<16x16xf32>
    %cst_41 = arith.constant 1.000000e+00 : f32
    %126 = vector.broadcast %cst_41 : f32 to vector<16x16xf32>
    %127 = arith.addf %126, %125 : vector<16x16xf32>
    %128 = arith.divf %126, %127 : vector<16x16xf32>
    %129 = arith.negf %117 : vector<16x16xf32>
    %130 = math.exp %129 : vector<16x16xf32>
    %cst_42 = arith.constant 1.000000e+00 : f32
    %131 = vector.broadcast %cst_42 : f32 to vector<16x16xf32>
    %132 = arith.addf %131, %130 : vector<16x16xf32>
    %133 = arith.divf %131, %132 : vector<16x16xf32>
    %134 = math.tanh %118 : vector<16x16xf32>
    %135 = arith.mulf %123, %106 : vector<16x16xf32>
    %136 = arith.mulf %128, %134 : vector<16x16xf32>
    %137 = arith.addf %135, %136 : vector<16x16xf32>
    %138 = math.tanh %137 : vector<16x16xf32>
    %139 = arith.mulf %133, %138 : vector<16x16xf32>
    %c0_43 = arith.constant 0 : index
    %c48 = arith.constant 48 : index
    %140 = vector.load %arg7[%c0_43, %c48] : memref<16x64xf32, #tpu.memory_space<vmem>>, vector<16x16xf32>
    tpu.vector_store %arg7[%c0_43, %c48], %139 {strides = array<i32>} : memref<16x64xf32, #tpu.memory_space<vmem>>, vector<16x16xf32>,
    %c0_44 = arith.constant 0 : index
    %c0_45 = arith.constant 0 : index
    %141 = vector.load %arg8[%c0_44, %c0_45] : memref<16x16xf32, #tpu.memory_space<vmem>>, vector<16x16xf32>
    tpu.vector_store %arg8[%c0_44, %c0_45], %139 {strides = array<i32>} : memref<16x16xf32, #tpu.memory_space<vmem>>, vector<16x16xf32>,
    %c0_46 = arith.constant 0 : index
    %c0_47 = arith.constant 0 : index
    %142 = vector.load %arg9[%c0_46, %c0_47] : memref<16x16xf32, #tpu.memory_space<vmem>>, vector<16x16xf32>
    tpu.vector_store %arg9[%c0_46, %c0_47], %137 {strides = array<i32>} : memref<16x16xf32, #tpu.memory_space<vmem>>, vector<16x16xf32>,
    return
  }
}

</mosaic_0001>

<llo_original>
// kernel: decoder_forward.1
$region0: #{decoder_forward.1}
  #allocation0 [shape = 'u32[]', space=smem, size = 0x4, offset = 0x4, fixed_abs, tag = 'smem constant byte address 0x4 - core index']
  #allocation1 [shape = 'u32[144,128]{1,0:T(1,128)}', space=vmem, size = 0x12000, scoped, tag = 'internal scratch']
  %s0 = inlined_call_operand.hbm [shape: f32[16,16], index: 0, kind: input, shape index: {}]
  %s1 = inlined_call_operand.vmem [shape: f32[16,64], index: 1, kind: input, shape index: {}]
  %s2 = inlined_call_operand.vmem [shape: f32[64,32], index: 2, kind: input, shape index: {}]
  %s3 = inlined_call_operand.vmem [shape: f32[1,32], index: 3, kind: input, shape index: {}]
  %s4 = inlined_call_operand.vmem [shape: f32[32,256], index: 4, kind: input, shape index: {}]
  %s5 = inlined_call_operand.vmem [shape: f32[1,256], index: 5, kind: input, shape index: {}]
  %s6 = inlined_call_operand.vmem [shape: f32[16,256], index: 6, kind: input, shape index: {}]
  %s7 = inlined_call_operand.vmem [shape: f32[16,64], index: 7, kind: output, shape index: {0}]
  %s8 = inlined_call_operand.hbm [shape: f32[16,16], index: 8, kind: output, shape index: {1}]
  %s9 = inlined_call_operand.hbm [shape: f32[16,16], index: 9, kind: output, shape index: {2}]
  %10 = xla_tuple %s7, %s8, %s9
  %s11 = sld [smem:[#allocation0]]
  $region58: #{decoder_forward.1} parent=0
    _
  %s13 = ssub.s32 1, %s11
  %s14 = scalar_select 0, %s13, %s11
  $region1: #{decoder_forward.1} parent=0
    #allocation2 [shape = 'u8[8192]{0}', space=vmem, size = 0x2000, scoped, tag = 'input window, operand 0, single buffered']
    #allocation3 [shape = 's32[1]{0}', space=sflag, size = 0x4, scoped, tag = 'scoped memory for decoder_forward.1']
    #allocation4 [shape = 's32[1]{0}', space=sflag, size = 0x4, scoped, tag = 'scoped memory for decoder_forward.1']
    #allocation5 [shape = 'u8[8192]{0}', space=vmem, size = 0x2000, scoped, tag = 'output window, operand 1, single buffered']
    #allocation6 [shape = 'u8[8192]{0}', space=vmem, size = 0x2000, scoped, tag = 'output window, operand 2, single buffered']
    #allocation7 [shape = 's32[1]{0}', space=sflag, size = 0x4, scoped, tag = 'scoped memory for decoder_forward.1']
    %15 = vsyncpa [#allocation3], 0
    %16 = vsyncpa [#allocation4], 0
    %17 = vsyncpa [#allocation7], 0
    // Predicated region
    $region2: #{decoder_forward.1} parent=1 // pred_check
      _
    $region3: #{decoder_forward.1} parent=1 // pred_check_branch
      %19 = sbr.rel (0) target = $region5
    $region4: #{decoder_forward.1} parent=1 // pred_region
      %s21 = ssub.s32 256, 256
      %22 = vsyncadd [#allocation3], %s21
      %s23 = sshll.u32 [#allocation2], 4
      %s24 = int_to_ptr.vmem [resolvable:$true] %s23
      %29 = dma.hbm_to_vmem [thread:$0]  %s0, 256, %s24, [#allocation3], 128, 128, 8
    $region5: #{decoder_forward.1} parent=1 // pred_fallthru
      _
    // Predicated region
    $region6: #{decoder_forward.1} parent=1 // pred_check
      _
    $region7: #{decoder_forward.1} parent=1 // pred_check_branch
      %31 = sbr.rel (0) target = $region9
    $region8: #{decoder_forward.1} parent=1 // pred_region
      _
    $region9: #{decoder_forward.1} parent=1 // pred_fallthru
      _
    // Predicated region
    $region10: #{decoder_forward.1} parent=1 // pred_check
      _
    $region11: #{decoder_forward.1} parent=1 // pred_check_branch
      %33 = sbr.rel (0) target = $region13
    $region12: #{decoder_forward.1} parent=1 // pred_region
      _
    $region13: #{decoder_forward.1} parent=1 // pred_fallthru
      _
    // Predicated region
    $region14: #{decoder_forward.1} parent=1 // pred_check
      _
    $region15: #{decoder_forward.1} parent=1 // pred_check_branch
      %35 = sbr.rel (0) target = $region17
    $region16: #{decoder_forward.1} parent=1 // pred_region
      _
    $region17: #{decoder_forward.1} parent=1 // pred_fallthru
      _
    // Predicated region
    $region18: #{decoder_forward.1} parent=1 // pred_check
      _
    $region19: #{decoder_forward.1} parent=1 // pred_check_branch
      %37 = sbr.rel (0) target = $region21
    $region20: #{decoder_forward.1} parent=1 // pred_region
      _
    $region21: #{decoder_forward.1} parent=1 // pred_fallthru
      _
    // Predicated region
    $region22: #{decoder_forward.1} parent=1 // pred_check
      _
    $region23: #{decoder_forward.1} parent=1 // pred_check_branch
      %39 = sbr.rel (0) target = $region25
    $region24: #{decoder_forward.1} parent=1 // pred_region
      _
    $region25: #{decoder_forward.1} parent=1 // pred_fallthru
      _
    // Predicated region
    $region26: #{decoder_forward.1} parent=1 // pred_check
      _
    $region27: #{decoder_forward.1} parent=1 // pred_check_branch
      %41 = sbr.rel (0) target = $region29
    $region28: #{decoder_forward.1} parent=1 // pred_region
      _
    $region29: #{decoder_forward.1} parent=1 // pred_fallthru
      _
    // Predicated region
    $region30: #{decoder_forward.1} parent=1 // pred_check
      _
    $region31: #{decoder_forward.1} parent=1 // pred_check_branch
      %43 = sbr.rel (0) target = $region33
    $region32: #{decoder_forward.1} parent=1 // pred_region
      %44 = dma.done [#allocation3], 256
    $region33: #{decoder_forward.1} parent=1 // pred_fallthru
      _
    %v45 = vld [vmem:[#allocation2] sm:$0xff]
    %v46 = vld [vmem:[#allocation2 + $0x8] sm:$0xff]
    %v47 = vld [vmem:[%s1] sm:$0xff]
    %v48 = vld [vmem:[%s1 + $0x8] sm:$0xff]
    %v49 = vld [vmem:[%s2] sm:$0xff]
    %v50 = vld [vmem:[%s2 + $0x8] sm:$0xff]
    %v51 = vld [vmem:[%s2 + $0x10] sm:$0xff]
    %v52 = vld [vmem:[%s2 + $0x18] sm:$0xff]
    %v53 = vld [vmem:[%s2 + $0x20] sm:$0xff]
    %v54 = vld [vmem:[%s2 + $0x28] sm:$0xff]
    %v55 = vld [vmem:[%s2 + $0x30] sm:$0xff]
    %v56 = vld [vmem:[%s2 + $0x38] sm:$0xff]
    %vm57 = vcmask 523264
    %v59 = vsel %vm57, %v47, 0
    %v62 = vsel %vm57, %v48, 0
    %64 = vmatprep.subr.mxu0 0.0
    %65 = vmatpush1.msra.mxu0 %v49
    %66 = vmatprep.subr.mxu0 0.0
    %67 = vmatpush1.msra.mxu0 %v50
    %68 = vmatprep.subr.mxu0 0.0
    %69 = vmatpush1.msra.mxu0 %v51
    %70 = vmatprep.subr.mxu0 0.0
    %71 = vmatpush1.msra.mxu0 %v52
    %72 = vmatprep.subr.mxu0 0.0
    %73 = vmatpush1.msra.mxu0 %v53
    %74 = vmatprep.subr.mxu0 0.0
    %75 = vmatpush1.msra.mxu0 %v54
    %76 = vmatprep.subr.mxu0 0.0
    %77 = vmatpush1.msra.mxu0 %v55
    %78 = vmatprep.subr.mxu0 0.0
    %79 = vmatpush1.msra.mxu0 %v56
    %80 = vmatprep.subr.mxu0 0.0
    %81 = vmatpush1.msra.mxu0 0.0
    %82 = vmatprep.subr.mxu0 0.0
    %83 = vmatpush1.msra.mxu0 0.0
    %84 = vmatprep.subr.mxu0 0.0
    %85 = vmatpush1.msra.mxu0 0.0
    %86 = vmatprep.subr.mxu0 0.0
    %87 = vmatpush1.msra.mxu0 0.0
    %88 = vmatprep.subr.mxu0 0.0
    %89 = vmatpush1.msra.mxu0 0.0
    %90 = vmatprep.subr.mxu0 0.0
    %91 = vmatpush1.msra.mxu0 0.0
    %92 = vmatprep.subr.mxu0 0.0
    %93 = vmatpush1.msra.mxu0 0.0
    %94 = vmatprep.subr.mxu0 0.0
    %95 = vmatpush1.msra.mxu0 0.0
    %96 = vmatprep.subr.mxu0 0.0
    %97 = vmatpush1.msra.mxu0 0.0
    %98 = vmatprep.subr.mxu0 0.0
    %99 = vmatpush1.msra.mxu0 0.0
    %100 = vmatprep.subr.mxu0 0.0
    %101 = vmatpush1.msra.mxu0 0.0
    %102 = vmatprep.subr.mxu0 0.0
    %103 = vmatpush1.msra.mxu0 0.0
    %104 = vmatprep.subr.mxu0 0.0
    %105 = vmatpush1.msra.mxu0 0.0
    %106 = vmatprep.subr.mxu0 0.0
    %107 = vmatpush1.msra.mxu0 0.0
    %108 = vmatprep.subr.mxu0 0.0
    %109 = vmatpush1.msra.mxu0 0.0
    %110 = vmatprep.subr.mxu0 0.0
    %111 = vmatpush1.msra.mxu0 0.0
    %112 = vmatprep.subr.mxu0 0.0
    %113 = vmatpush1.msra.mxu0 0.0
    %114 = vmatprep.subr.mxu0 0.0
    %115 = vmatpush1.msra.mxu0 0.0
    %116 = vmatprep.subr.mxu0 0.0
    %117 = vmatpush1.msra.mxu0 0.0
    %118 = vmatprep.subr.mxu0 0.0
    %119 = vmatpush1.msra.mxu0 0.0
    %120 = vmatprep.subr.mxu0 0.0
    %121 = vmatpush1.msra.mxu0 0.0
    %122 = vmatprep.subr.mxu0 0.0
    %123 = vmatpush1.msra.mxu0 0.0
    %124 = vmatprep.subr.mxu0 0.0
    %125 = vmatpush1.msra.mxu0 0.0
    %126 = vmatprep.subr.mxu0 0.0
    %127 = vmatpush1.msra.mxu0 0.0
    %128 = vmatprep.mubr.f32.mxu0 0.0
    %129 = vmatmul.mubr.f32.gmra.mrb[0].mxu0 %v59
    %v130 = vpop.f32.mrb[0].mxu0
    %v131 = vadd.f32 0.0, %v130
    %v132 = vpop.f32.mrb[0].mxu0
    %133 = vmatprep.mubr.f32.mxu0 0.0
    %134 = vmatmul.mubr.f32.gmra.mrb[0].mxu0 %v62
    %v135 = vpop.f32.mrb[0].mxu0
    %v136 = vadd.f32 0.0, %v135
    %v137 = vpop.f32.mrb[0].mxu0
    %138 = vdwg.mxu0
    %v139 = vld [vmem:[%s3] sm:$0x1]
    %v141 = vlaneseq
    %v142 = vshrl.u32 %v141, 7
    %v143 = vsub.s32 0, %v142
    %v144 = vrot.slane %v139, %v143
    %vm146 = vcmask 130048
    %v148 = vsel %vm146, %v45, 0
    %v151 = vsel %vm146, %v46, 0
    %153 = vmatprep.subr.mxu0 0.0
    %154 = vmatpush1.msra.mxu0 %v131
    %155 = vmatprep.subr.mxu0 0.0
    %156 = vmatpush1.msra.mxu0 %v136
    %157 = vmatprep.subr.mxu0 0.0
    %158 = vmatpush1.msra.mxu0 0.0
    %159 = vmatprep.subr.mxu0 0.0
    %160 = vmatpush1.msra.mxu0 0.0
    %161 = vmatprep.subr.mxu0 0.0
    %162 = vmatpush1.msra.mxu0 0.0
    %163 = vmatprep.subr.mxu0 0.0
    %164 = vmatpush1.msra.mxu0 0.0
    %165 = vmatprep.subr.mxu0 0.0
    %166 = vmatpush1.msra.mxu0 0.0
    %167 = vmatprep.subr.mxu0 0.0
    %168 = vmatpush1.msra.mxu0 0.0
    %169 = vmatprep.subr.mxu0 0.0
    %170 = vmatpush1.msra.mxu0 0.0
    %171 = vmatprep.subr.mxu0 0.0
    %172 = vmatpush1.msra.mxu0 0.0
    %173 = vmatprep.subr.mxu0 0.0
    %174 = vmatpush1.msra.mxu0 0.0
    %175 = vmatprep.subr.mxu0 0.0
    %176 = vmatpush1.msra.mxu0 0.0
    %177 = vmatprep.subr.mxu0 0.0
    %178 = vmatpush1.msra.mxu0 0.0
    %179 = vmatprep.subr.mxu0 0.0
    %180 = vmatpush1.msra.mxu0 0.0
    %181 = vmatprep.subr.mxu0 0.0
    %182 = vmatpush1.msra.mxu0 0.0
    %183 = vmatprep.subr.mxu0 0.0
    %184 = vmatpush1.msra.mxu0 0.0
    %185 = vmatprep.subr.mxu0 0.0
    %186 = vmatpush1.msra.mxu0 0.0
    %187 = vmatprep.subr.mxu0 0.0
    %188 = vmatpush1.msra.mxu0 0.0
    %189 = vmatprep.subr.mxu0 0.0
    %190 = vmatpush1.msra.mxu0 0.0
    %191 = vmatprep.subr.mxu0 0.0
    %192 = vmatpush1.msra.mxu0 0.0
    %193 = vmatprep.subr.mxu0 0.0
    %194 = vmatpush1.msra.mxu0 0.0
    %195 = vmatprep.subr.mxu0 0.0
    %196 = vmatpush1.msra.mxu0 0.0
    %197 = vmatprep.subr.mxu0 0.0
    %198 = vmatpush1.msra.mxu0 0.0
    %199 = vmatprep.subr.mxu0 0.0
    %200 = vmatpush1.msra.mxu0 0.0
    %201 = vmatprep.subr.mxu0 0.0
    %202 = vmatpush1.msra.mxu0 0.0
    %203 = vmatprep.subr.mxu0 0.0
    %204 = vmatpush1.msra.mxu0 0.0
    %205 = vmatprep.subr.mxu0 0.0
    %206 = vmatpush1.msra.mxu0 0.0
    %207 = vmatprep.subr.mxu0 0.0
    %208 = vmatpush1.msra.mxu0 0.0
    %209 = vmatprep.subr.mxu0 0.0
    %210 = vmatpush1.msra.mxu0 0.0
    %211 = vmatprep.subr.mxu0 0.0
    %212 = vmatpush1.msra.mxu0 0.0
    %213 = vmatprep.subr.mxu0 0.0
    %214 = vmatpush1.msra.mxu0 0.0
    %215 = vmatprep.subr.mxu0 0.0
    %216 = vmatpush1.msra.mxu0 0.0
    %217 = vmatprep.mubr.f32.mxu0 0.0
    %218 = vmatmul.mubr.f32.gmra.mrb[0].mxu0 %v148
    %v219 = vpop.f32.mrb[0].mxu0
    %v220 = vadd.f32 %v144, %v219
    %v221 = vpop.f32.mrb[0].mxu0
    %222 = vmatprep.mubr.f32.mxu0 0.0
    %223 = vmatmul.mubr.f32.gmra.mrb[0].mxu0 %v151
    %v224 = vpop.f32.mrb[0].mxu0
    %v225 = vadd.f32 %v144, %v224
    %v226 = vpop.f32.mrb[0].mxu0
    %227 = vdwg.mxu0
    %v228 = vld [vmem:[%s4] sm:$0xff]
    %v229 = vld [vmem:[%s4 + $0x8] sm:$0xff]
    %v230 = vld [vmem:[%s4 + $0x10] sm:$0xff]
    %v231 = vld [vmem:[%s4 + $0x18] sm:$0xff]
    %v232 = vld [vmem:[%s4 + $0x20] sm:$0xff]
    %v233 = vld [vmem:[%s4 + $0x28] sm:$0xff]
    %v234 = vld [vmem:[%s4 + $0x30] sm:$0xff]
    %v235 = vld [vmem:[%s4 + $0x38] sm:$0xff]
    %vm236 = vcmask 261120
    %v237 = vsel %vm236, %v47, 0
    %v239 = vsel %vm236, %v48, 0
    %241 = vmatprep.subr.mxu0 %v229
    %242 = vmatpush1.msra.mxu0 %v228
    %243 = vmatprep.subr.mxu0 %v231
    %244 = vmatpush1.msra.mxu0 %v230
    %245 = vmatprep.subr.mxu0 %v233
    %246 = vmatpush1.msra.mxu0 %v232
    %247 = vmatprep.subr.mxu0 %v235
    %248 = vmatpush1.msra.mxu0 %v234
    %249 = vmatprep.subr.mxu0 0.0
    %250 = vmatpush1.msra.mxu0 0.0
    %251 = vmatprep.subr.mxu0 0.0
    %252 = vmatpush1.msra.mxu0 0.0
    %253 = vmatprep.subr.mxu0 0.0
    %254 = vmatpush1.msra.mxu0 0.0
    %255 = vmatprep.subr.mxu0 0.0
    %256 = vmatpush1.msra.mxu0 0.0
    %257 = vmatprep.subr.mxu0 0.0
    %258 = vmatpush1.msra.mxu0 0.0
    %259 = vmatprep.subr.mxu0 0.0
    %260 = vmatpush1.msra.mxu0 0.0
    %261 = vmatprep.subr.mxu0 0.0
    %262 = vmatpush1.msra.mxu0 0.0
    %263 = vmatprep.subr.mxu0 0.0
    %264 = vmatpush1.msra.mxu0 0.0
    %265 = vmatprep.subr.mxu0 0.0
    %266 = vmatpush1.msra.mxu0 0.0
    %267 = vmatprep.subr.mxu0 0.0
    %268 = vmatpush1.msra.mxu0 0.0
    %269 = vmatprep.subr.mxu0 0.0
    %270 = vmatpush1.msra.mxu0 0.0
    %271 = vmatprep.subr.mxu0 0.0
    %272 = vmatpush1.msra.mxu0 0.0
    %273 = vmatprep.subr.mxu0 0.0
    %274 = vmatpush1.msra.mxu0 0.0
    %275 = vmatprep.subr.mxu0 0.0
    %276 = vmatpush1.msra.mxu0 0.0
    %277 = vmatprep.subr.mxu0 0.0
    %278 = vmatpush1.msra.mxu0 0.0
    %279 = vmatprep.subr.mxu0 0.0
    %280 = vmatpush1.msra.mxu0 0.0
    %281 = vmatprep.subr.mxu0 0.0
    %282 = vmatpush1.msra.mxu0 0.0
    %283 = vmatprep.subr.mxu0 0.0
    %284 = vmatpush1.msra.mxu0 0.0
    %285 = vmatprep.subr.mxu0 0.0
    %286 = vmatpush1.msra.mxu0 0.0
    %287 = vmatprep.subr.mxu0 0.0
    %288 = vmatpush1.msra.mxu0 0.0
    %289 = vmatprep.subr.mxu0 0.0
    %290 = vmatpush1.msra.mxu0 0.0
    %291 = vmatprep.subr.mxu0 0.0
    %292 = vmatpush1.msra.mxu0 0.0
    %293 = vmatprep.subr.mxu0 0.0
    %294 = vmatpush1.msra.mxu0 0.0
    %295 = vmatprep.subr.mxu0 0.0
    %296 = vmatpush1.msra.mxu0 0.0
    %297 = vmatprep.subr.mxu0 0.0
    %298 = vmatpush1.msra.mxu0 0.0
    %299 = vmatprep.subr.mxu0 0.0
    %300 = vmatpush1.msra.mxu0 0.0
    %301 = vmatprep.subr.mxu0 0.0
    %302 = vmatpush1.msra.mxu0 0.0
    %303 = vmatprep.subr.mxu0 0.0
    %304 = vmatpush1.msra.mxu0 0.0
    %305 = vmatprep.mubr.f32.mxu0 0.0
    %306 = vmatmul.mubr.f32.gmra.mrb[0].mxu0 %v237
    %v307 = vpop.f32.mrb[0].mxu0
    %v308 = vadd.f32 0.0, %v307
    %v309 = vpop.f32.mrb[0].mxu0
    %v310 = vadd.f32 0.0, %v309
    %311 = vmatprep.mubr.f32.mxu0 0.0
    %312 = vmatmul.mubr.f32.gmra.mrb[0].mxu0 %v239
    %v313 = vpop.f32.mrb[0].mxu0
    %v314 = vadd.f32 0.0, %v313
    %v315 = vpop.f32.mrb[0].mxu0
    %v316 = vadd.f32 0.0, %v315
    %317 = vdwg.mxu0
    %v318 = vld [vmem:[%s5] sm:$0x3]
    %v320 = vlaneseq
    %v321 = vshrl.u32 %v320, 7
    %v322 = vsub.s32 0, %v321
    %v323 = vrot.slane %v318, %v322
    %v324 = vlaneseq
    %v325 = vshrl.u32 %v324, 7
    %v326 = vsub.s32 1, %v325
    %v327 = vrot.slane %v318, %v326
    %330 = vmatprep.subr.mxu0 %v310
    %331 = vmatpush1.msra.mxu0 %v308
    %332 = vmatprep.subr.mxu0 %v316
    %333 = vmatpush1.msra.mxu0 %v314
    %334 = vmatprep.subr.mxu0 0.0
    %335 = vmatpush1.msra.mxu0 0.0
    %336 = vmatprep.subr.mxu0 0.0
    %337 = vmatpush1.msra.mxu0 0.0
    %338 = vmatprep.subr.mxu0 0.0
    %339 = vmatpush1.msra.mxu0 0.0
    %340 = vmatprep.subr.mxu0 0.0
    %341 = vmatpush1.msra.mxu0 0.0
    %342 = vmatprep.subr.mxu0 0.0
    %343 = vmatpush1.msra.mxu0 0.0
    %344 = vmatprep.subr.mxu0 0.0
    %345 = vmatpush1.msra.mxu0 0.0
    %346 = vmatprep.subr.mxu0 0.0
    %347 = vmatpush1.msra.mxu0 0.0
    %348 = vmatprep.subr.mxu0 0.0
    %349 = vmatpush1.msra.mxu0 0.0
    %350 = vmatprep.subr.mxu0 0.0
    %351 = vmatpush1.msra.mxu0 0.0
    %352 = vmatprep.subr.mxu0 0.0
    %353 = vmatpush1.msra.mxu0 0.0
    %354 = vmatprep.subr.mxu0 0.0
    %355 = vmatpush1.msra.mxu0 0.0
    %356 = vmatprep.subr.mxu0 0.0
    %357 = vmatpush1.msra.mxu0 0.0
    %358 = vmatprep.subr.mxu0 0.0
    %359 = vmatpush1.msra.mxu0 0.0
    %360 = vmatprep.subr.mxu0 0.0
    %361 = vmatpush1.msra.mxu0 0.0
    %362 = vmatprep.subr.mxu0 0.0
    %363 = vmatpush1.msra.mxu0 0.0
    %364 = vmatprep.subr.mxu0 0.0
    %365 = vmatpush1.msra.mxu0 0.0
    %366 = vmatprep.subr.mxu0 0.0
    %367 = vmatpush1.msra.mxu0 0.0
    %368 = vmatprep.subr.mxu0 0.0
    %369 = vmatpush1.msra.mxu0 0.0
    %370 = vmatprep.subr.mxu0 0.0
    %371 = vmatpush1.msra.mxu0 0.0
    %372 = vmatprep.subr.mxu0 0.0
    %373 = vmatpush1.msra.mxu0 0.0
    %374 = vmatprep.subr.mxu0 0.0
    %375 = vmatpush1.msra.mxu0 0.0
    %376 = vmatprep.subr.mxu0 0.0
    %377 = vmatpush1.msra.mxu0 0.0
    %378 = vmatprep.subr.mxu0 0.0
    %379 = vmatpush1.msra.mxu0 0.0
    %380 = vmatprep.subr.mxu0 0.0
    %381 = vmatpush1.msra.mxu0 0.0
    %382 = vmatprep.subr.mxu0 0.0
    %383 = vmatpush1.msra.mxu0 0.0
    %384 = vmatprep.subr.mxu0 0.0
    %385 = vmatpush1.msra.mxu0 0.0
    %386 = vmatprep.subr.mxu0 0.0
    %387 = vmatpush1.msra.mxu0 0.0
    %388 = vmatprep.subr.mxu0 0.0
    %389 = vmatpush1.msra.mxu0 0.0
    %390 = vmatprep.subr.mxu0 0.0
    %391 = vmatpush1.msra.mxu0 0.0
    %392 = vmatprep.subr.mxu0 0.0
    %393 = vmatpush1.msra.mxu0 0.0
    %394 = vmatprep.mubr.f32.mxu0 0.0
    %395 = vmatmul.mubr.f32.gmra.mrb[0].mxu0 %v148
    %v396 = vpop.f32.mrb[0].mxu0
    %v397 = vadd.f32 %v323, %v396
    %v398 = vpop.f32.mrb[0].mxu0
    %v399 = vadd.f32 %v327, %v398
    %400 = vmatprep.mubr.f32.mxu0 0.0
    %401 = vmatmul.mubr.f32.gmra.mrb[0].mxu0 %v151
    %v402 = vpop.f32.mrb[0].mxu0
    %v403 = vadd.f32 %v323, %v402
    %v404 = vpop.f32.mrb[0].mxu0
    %v405 = vadd.f32 %v327, %v404
    %406 = vdwg.mxu0
    %v407 = vld [vmem:[%s6] sm:$0xff]
    %v408 = vld [vmem:[%s6 + $0x10] sm:$0xff]
    %v410 = vsel %vm146, %v220, 0
    %v413 = vsel %vm146, %v225, 0
    %415 = vmatprep.subr.mxu0 0.0
    %416 = vmatpush1.msra.mxu0 %v407
    %417 = vmatprep.subr.mxu0 0.0
    %418 = vmatpush1.msra.mxu0 %v408
    %419 = vmatprep.subr.mxu0 0.0
    %420 = vmatpush1.msra.mxu0 0.0
    %421 = vmatprep.subr.mxu0 0.0
    %422 = vmatpush1.msra.mxu0 0.0
    %423 = vmatprep.subr.mxu0 0.0
    %424 = vmatpush1.msra.mxu0 0.0
    %425 = vmatprep.subr.mxu0 0.0
    %426 = vmatpush1.msra.mxu0 0.0
    %427 = vmatprep.subr.mxu0 0.0
    %428 = vmatpush1.msra.mxu0 0.0
    %429 = vmatprep.subr.mxu0 0.0
    %430 = vmatpush1.msra.mxu0 0.0
    %431 = vmatprep.subr.mxu0 0.0
    %432 = vmatpush1.msra.mxu0 0.0
    %433 = vmatprep.subr.mxu0 0.0
    %434 = vmatpush1.msra.mxu0 0.0
    %435 = vmatprep.subr.mxu0 0.0
    %436 = vmatpush1.msra.mxu0 0.0
    %437 = vmatprep.subr.mxu0 0.0
    %438 = vmatpush1.msra.mxu0 0.0
    %439 = vmatprep.subr.mxu0 0.0
    %440 = vmatpush1.msra.mxu0 0.0
    %441 = vmatprep.subr.mxu0 0.0
    %442 = vmatpush1.msra.mxu0 0.0
    %443 = vmatprep.subr.mxu0 0.0
    %444 = vmatpush1.msra.mxu0 0.0
    %445 = vmatprep.subr.mxu0 0.0
    %446 = vmatpush1.msra.mxu0 0.0
    %447 = vmatprep.subr.mxu0 0.0
    %448 = vmatpush1.msra.mxu0 0.0
    %449 = vmatprep.subr.mxu0 0.0
    %450 = vmatpush1.msra.mxu0 0.0
    %451 = vmatprep.subr.mxu0 0.0
    %452 = vmatpush1.msra.mxu0 0.0
    %453 = vmatprep.subr.mxu0 0.0
    %454 = vmatpush1.msra.mxu0 0.0
    %455 = vmatprep.subr.mxu0 0.0
    %456 = vmatpush1.msra.mxu0 0.0
    %457 = vmatprep.subr.mxu0 0.0
    %458 = vmatpush1.msra.mxu0 0.0
    %459 = vmatprep.subr.mxu0 0.0
    %460 = vmatpush1.msra.mxu0 0.0
    %461 = vmatprep.subr.mxu0 0.0
    %462 = vmatpush1.msra.mxu0 0.0
    %463 = vmatprep.subr.mxu0 0.0
    %464 = vmatpush1.msra.mxu0 0.0
    %465 = vmatprep.subr.mxu0 0.0
    %466 = vmatpush1.msra.mxu0 0.0
    %467 = vmatprep.subr.mxu0 0.0
    %468 = vmatpush1.msra.mxu0 0.0
    %469 = vmatprep.subr.mxu0 0.0
    %470 = vmatpush1.msra.mxu0 0.0
    %471 = vmatprep.subr.mxu0 0.0
    %472 = vmatpush1.msra.mxu0 0.0
    %473 = vmatprep.subr.mxu0 0.0
    %474 = vmatpush1.msra.mxu0 0.0
    %475 = vmatprep.subr.mxu0 0.0
    %476 = vmatpush1.msra.mxu0 0.0
    %477 = vmatprep.subr.mxu0 0.0
    %478 = vmatpush1.msra.mxu0 0.0
    %479 = vmatprep.mubr.f32.mxu0 0.0
    %480 = vmatmul.mubr.f32.gmra.mrb[0].mxu0 %v410
    %v481 = vpop.f32.mrb[0].mxu0
    %v482 = vadd.f32 0.0, %v481
    %v483 = vpop.f32.mrb[0].mxu0
    %484 = vmatprep.mubr.f32.mxu0 0.0
    %485 = vmatmul.mubr.f32.gmra.mrb[0].mxu0 %v413
    %v486 = vpop.f32.mrb[0].mxu0
    %v487 = vadd.f32 0.0, %v486
    %v488 = vpop.f32.mrb[0].mxu0
    %489 = vdwg.mxu0
    %490 = vmatprep.subr.mxu0 0.0
    %491 = vmatpush1.msra.mxu0 %v482
    %492 = vmatprep.subr.mxu0 0.0
    %493 = vmatpush1.msra.mxu0 %v487
    %494 = vmatprep.subr.mxu0 0.0
    %495 = vmatpush1.msra.mxu0 0.0
    %496 = vmatprep.subr.mxu0 0.0
    %497 = vmatpush1.msra.mxu0 0.0
    %498 = vmatprep.subr.mxu0 0.0
    %499 = vmatpush1.msra.mxu0 0.0
    %500 = vmatprep.subr.mxu0 0.0
    %501 = vmatpush1.msra.mxu0 0.0
    %502 = vmatprep.subr.mxu0 0.0
    %503 = vmatpush1.msra.mxu0 0.0
    %504 = vmatprep.subr.mxu0 0.0
    %505 = vmatpush1.msra.mxu0 0.0
    %506 = vmatprep.subr.mxu0 0.0
    %507 = vmatpush1.msra.mxu0 0.0
    %508 = vmatprep.subr.mxu0 0.0
    %509 = vmatpush1.msra.mxu0 0.0
    %510 = vmatprep.subr.mxu0 0.0
    %511 = vmatpush1.msra.mxu0 0.0
    %512 = vmatprep.subr.mxu0 0.0
    %513 = vmatpush1.msra.mxu0 0.0
    %514 = vmatprep.subr.mxu0 0.0
    %515 = vmatpush1.msra.mxu0 0.0
    %516 = vmatprep.subr.mxu0 0.0
    %517 = vmatpush1.msra.mxu0 0.0
    %518 = vmatprep.subr.mxu0 0.0
    %519 = vmatpush1.msra.mxu0 0.0
    %520 = vmatprep.subr.mxu0 0.0
    %521 = vmatpush1.msra.mxu0 0.0
    %522 = vmatprep.subr.mxu0 0.0
    %523 = vmatpush1.msra.mxu0 0.0
    %524 = vmatprep.subr.mxu0 0.0
    %525 = vmatpush1.msra.mxu0 0.0
    %526 = vmatprep.subr.mxu0 0.0
    %527 = vmatpush1.msra.mxu0 0.0
    %528 = vmatprep.subr.mxu0 0.0
    %529 = vmatpush1.msra.mxu0 0.0
    %530 = vmatprep.subr.mxu0 0.0
    %531 = vmatpush1.msra.mxu0 0.0
    %532 = vmatprep.subr.mxu0 0.0
    %533 = vmatpush1.msra.mxu0 0.0
    %534 = vmatprep.subr.mxu0 0.0
    %535 = vmatpush1.msra.mxu0 0.0
    %536 = vmatprep.subr.mxu0 0.0
    %537 = vmatpush1.msra.mxu0 0.0
    %538 = vmatprep.subr.mxu0 0.0
    %539 = vmatpush1.msra.mxu0 0.0
    %540 = vmatprep.subr.mxu0 0.0
    %541 = vmatpush1.msra.mxu0 0.0
    %542 = vmatprep.subr.mxu0 0.0
    %543 = vmatpush1.msra.mxu0 0.0
    %544 = vmatprep.subr.mxu0 0.0
    %545 = vmatpush1.msra.mxu0 0.0
    %546 = vmatprep.subr.mxu0 0.0
    %547 = vmatpush1.msra.mxu0 0.0
    %548 = vmatprep.subr.mxu0 0.0
    %549 = vmatpush1.msra.mxu0 0.0
    %550 = vmatprep.subr.mxu0 0.0
    %551 = vmatpush1.msra.mxu0 0.0
    %552 = vmatprep.subr.mxu0 0.0
    %553 = vmatpush1.msra.mxu0 0.0
    %554 = vmatprep.mubr.f32.mxu0 0.0
    %555 = vmatmul.mubr.f32.gmra.mrb[0].mxu0 %v148
    %v556 = vpop.f32.mrb[0].mxu0
    %v557 = vadd.f32 0.0, %v556
    %v558 = vpop.f32.mrb[0].mxu0
    %559 = vmatprep.mubr.f32.mxu0 0.0
    %560 = vmatmul.mubr.f32.gmra.mrb[0].mxu0 %v151
    %v561 = vpop.f32.mrb[0].mxu0
    %v562 = vadd.f32 0.0, %v561
    %v563 = vpop.f32.mrb[0].mxu0
    %564 = vdwg.mxu0
    %v565 = vadd.f32 %v397, %v557
    %v566 = vadd.f32 %v403, %v562
    %v567 = vxor.u32 %v565, 2147483648
    %v568 = vxor.u32 %v566, 2147483648
    %v569 = vmul.f32 %v567, 1.442695
    %v570 = vpow.pop %v569
    %v571 = vmul.f32 %v568, 1.442695
    %v572 = vpow.pop %v571
    %v573 = vadd.f32 %v570, 1.0
    %v574 = vadd.f32 %v572, 1.0
    %v575 = vrcp.pop %v573
    %v576 = vmul.f32 1.0, %v575
    %v577 = vrcp.pop %v574
    %v578 = vmul.f32 1.0, %v577
    %v579 = vtanh.pop %v565
    %v580 = vtanh.pop %v566
    %581 = vrot.lane.b32.xlu0 %v220, 112
    %v582 = vpop.permute.xlu0 %581
    %583 = vrot.lane.b32.xlu0 %v225, 112
    %v584 = vpop.permute.xlu0 %583
    %v587 = vmul.f32 %v576, %v582
    %v588 = vmul.f32 %v578, %v584
    %591 = vrot.lane.b32.xlu0 %v579, 96
    %v592 = vpop.permute.xlu0 %591
    %593 = vrot.lane.b32.xlu0 %v580, 96
    %v594 = vpop.permute.xlu0 %593
    %v597 = vmul.f32 %v576, %v592
    %v598 = vmul.f32 %v578, %v594
    %601 = vrot.lane.b32.xlu0 %v597, 112
    %v602 = vpop.permute.xlu0 %601
    %603 = vrot.lane.b32.xlu0 %v598, 112
    %v604 = vpop.permute.xlu0 %603
    %v607 = vadd.f32 %v587, %v602
    %v608 = vadd.f32 %v588, %v604
    %v609 = vtanh.pop %v607
    %v610 = vtanh.pop %v608
    %613 = vrot.lane.b32.xlu0 %v609, 32
    %v614 = vpop.permute.xlu0 %613
    %615 = vrot.lane.b32.xlu0 %v610, 32
    %v616 = vpop.permute.xlu0 %615
    %v619 = vmul.f32 %v576, %v614
    %v620 = vmul.f32 %v578, %v616
    %623 = vrot.lane.b32.xlu0 %v619, 96
    %v624 = vpop.permute.xlu0 %623
    %625 = vrot.lane.b32.xlu0 %v620, 96
    %v626 = vpop.permute.xlu0 %625
    %629 = vst.msk [vmem:[%s7] sm:$0xff] %vm146, %v624
    %630 = vst.msk [vmem:[%s7 + $0x8] sm:$0xff] %vm146, %v626
    %v631 = vld [vmem:[%s6] sm:$0xff]
    %v632 = vld [vmem:[%s6 + $0x10] sm:$0xff]
    %635 = vrot.lane.b32.xlu0 %v631, 64
    %v636 = vpop.permute.xlu0 %635
    %637 = vrot.lane.b32.xlu0 %v632, 64
    %v638 = vpop.permute.xlu0 %637
    %v641 = vsel %vm146, %v624, 0
    %v643 = vsel %vm146, %v626, 0
    %645 = vmatprep.subr.mxu0 0.0
    %646 = vmatpush1.msra.mxu0 %v636
    %647 = vmatprep.subr.mxu0 0.0
    %648 = vmatpush1.msra.mxu0 %v638
    %649 = vmatprep.subr.mxu0 0.0
    %650 = vmatpush1.msra.mxu0 0.0
    %651 = vmatprep.subr.mxu0 0.0
    %652 = vmatpush1.msra.mxu0 0.0
    %653 = vmatprep.subr.mxu0 0.0
    %654 = vmatpush1.msra.mxu0 0.0
    %655 = vmatprep.subr.mxu0 0.0
    %656 = vmatpush1.msra.mxu0 0.0
    %657 = vmatprep.subr.mxu0 0.0
    %658 = vmatpush1.msra.mxu0 0.0
    %659 = vmatprep.subr.mxu0 0.0
    %660 = vmatpush1.msra.mxu0 0.0
    %661 = vmatprep.subr.mxu0 0.0
    %662 = vmatpush1.msra.mxu0 0.0
    %663 = vmatprep.subr.mxu0 0.0
    %664 = vmatpush1.msra.mxu0 0.0
    %665 = vmatprep.subr.mxu0 0.0
    %666 = vmatpush1.msra.mxu0 0.0
    %667 = vmatprep.subr.mxu0 0.0
    %668 = vmatpush1.msra.mxu0 0.0
    %669 = vmatprep.subr.mxu0 0.0
    %670 = vmatpush1.msra.mxu0 0.0
    %671 = vmatprep.subr.mxu0 0.0
    %672 = vmatpush1.msra.mxu0 0.0
    %673 = vmatprep.subr.mxu0 0.0
    %674 = vmatpush1.msra.mxu0 0.0
    %675 = vmatprep.subr.mxu0 0.0
    %676 = vmatpush1.msra.mxu0 0.0
    %677 = vmatprep.subr.mxu0 0.0
    %678 = vmatpush1.msra.mxu0 0.0
    %679 = vmatprep.subr.mxu0 0.0
    %680 = vmatpush1.msra.mxu0 0.0
    %681 = vmatprep.subr.mxu0 0.0
    %682 = vmatpush1.msra.mxu0 0.0
    %683 = vmatprep.subr.mxu0 0.0
    %684 = vmatpush1.msra.mxu0 0.0
    %685 = vmatprep.subr.mxu0 0.0
    %686 = vmatpush1.msra.mxu0 0.0
    %687 = vmatprep.subr.mxu0 0.0
    %688 = vmatpush1.msra.mxu0 0.0
    %689 = vmatprep.subr.mxu0 0.0
    %690 = vmatpush1.msra.mxu0 0.0
    %691 = vmatprep.subr.mxu0 0.0
    %692 = vmatpush1.msra.mxu0 0.0
    %693 = vmatprep.subr.mxu0 0.0
    %694 = vmatpush1.msra.mxu0 0.0
    %695 = vmatprep.subr.mxu0 0.0
    %696 = vmatpush1.msra.mxu0 0.0
    %697 = vmatprep.subr.mxu0 0.0
    %698 = vmatpush1.msra.mxu0 0.0
    %699 = vmatprep.subr.mxu0 0.0
    %700 = vmatpush1.msra.mxu0 0.0
    %701 = vmatprep.subr.mxu0 0.0
    %702 = vmatpush1.msra.mxu0 0.0
    %703 = vmatprep.subr.mxu0 0.0
    %704 = vmatpush1.msra.mxu0 0.0
    %705 = vmatprep.subr.mxu0 0.0
    %706 = vmatpush1.msra.mxu0 0.0
    %707 = vmatprep.subr.mxu0 0.0
    %708 = vmatpush1.msra.mxu0 0.0
    %709 = vmatprep.mubr.f32.mxu0 0.0
    %710 = vmatmul.mubr.f32.gmra.mrb[0].mxu0 %v641
    %v711 = vpop.f32.mrb[0].mxu0
    %v712 = vadd.f32 0.0, %v711
    %v713 = vpop.f32.mrb[0].mxu0
    %714 = vmatprep.mubr.f32.mxu0 0.0
    %715 = vmatmul.mubr.f32.gmra.mrb[0].mxu0 %v643
    %v716 = vpop.f32.mrb[0].mxu0
    %v717 = vadd.f32 0.0, %v716
    %v718 = vpop.f32.mrb[0].mxu0
    %719 = vdwg.mxu0
    %720 = vmatprep.subr.mxu0 0.0
    %721 = vmatpush1.msra.mxu0 %v712
    %722 = vmatprep.subr.mxu0 0.0
    %723 = vmatpush1.msra.mxu0 %v717
    %724 = vmatprep.subr.mxu0 0.0
    %725 = vmatpush1.msra.mxu0 0.0
    %726 = vmatprep.subr.mxu0 0.0
    %727 = vmatpush1.msra.mxu0 0.0
    %728 = vmatprep.subr.mxu0 0.0
    %729 = vmatpush1.msra.mxu0 0.0
    %730 = vmatprep.subr.mxu0 0.0
    %731 = vmatpush1.msra.mxu0 0.0
    %732 = vmatprep.subr.mxu0 0.0
    %733 = vmatpush1.msra.mxu0 0.0
    %734 = vmatprep.subr.mxu0 0.0
    %735 = vmatpush1.msra.mxu0 0.0
    %736 = vmatprep.subr.mxu0 0.0
    %737 = vmatpush1.msra.mxu0 0.0
    %738 = vmatprep.subr.mxu0 0.0
    %739 = vmatpush1.msra.mxu0 0.0
    %740 = vmatprep.subr.mxu0 0.0
    %741 = vmatpush1.msra.mxu0 0.0
    %742 = vmatprep.subr.mxu0 0.0
    %743 = vmatpush1.msra.mxu0 0.0
    %744 = vmatprep.subr.mxu0 0.0
    %745 = vmatpush1.msra.mxu0 0.0
    %746 = vmatprep.subr.mxu0 0.0
    %747 = vmatpush1.msra.mxu0 0.0
    %748 = vmatprep.subr.mxu0 0.0
    %749 = vmatpush1.msra.mxu0 0.0
    %750 = vmatprep.subr.mxu0 0.0
    %751 = vmatpush1.msra.mxu0 0.0
    %752 = vmatprep.subr.mxu0 0.0
    %753 = vmatpush1.msra.mxu0 0.0
    %754 = vmatprep.subr.mxu0 0.0
    %755 = vmatpush1.msra.mxu0 0.0
    %756 = vmatprep.subr.mxu0 0.0
    %757 = vmatpush1.msra.mxu0 0.0
    %758 = vmatprep.subr.mxu0 0.0
    %759 = vmatpush1.msra.mxu0 0.0
    %760 = vmatprep.subr.mxu0 0.0
    %761 = vmatpush1.msra.mxu0 0.0
    %762 = vmatprep.subr.mxu0 0.0
    %763 = vmatpush1.msra.mxu0 0.0
    %764 = vmatprep.subr.mxu0 0.0
    %765 = vmatpush1.msra.mxu0 0.0
    %766 = vmatprep.subr.mxu0 0.0
    %767 = vmatpush1.msra.mxu0 0.0
    %768 = vmatprep.subr.mxu0 0.0
    %769 = vmatpush1.msra.mxu0 0.0
    %770 = vmatprep.subr.mxu0 0.0
    %771 = vmatpush1.msra.mxu0 0.0
    %772 = vmatprep.subr.mxu0 0.0
    %773 = vmatpush1.msra.mxu0 0.0
    %774 = vmatprep.subr.mxu0 0.0
    %775 = vmatpush1.msra.mxu0 0.0
    %776 = vmatprep.subr.mxu0 0.0
    %777 = vmatpush1.msra.mxu0 0.0
    %778 = vmatprep.subr.mxu0 0.0
    %779 = vmatpush1.msra.mxu0 0.0
    %780 = vmatprep.subr.mxu0 0.0
    %781 = vmatpush1.msra.mxu0 0.0
    %782 = vmatprep.subr.mxu0 0.0
    %783 = vmatpush1.msra.mxu0 0.0
    %784 = vmatprep.mubr.f32.mxu0 0.0
    %785 = vmatmul.mubr.f32.gmra.mrb[0].mxu0 %v148
    %v786 = vpop.f32.mrb[0].mxu0
    %v787 = vadd.f32 0.0, %v786
    %v788 = vpop.f32.mrb[0].mxu0
    %789 = vmatprep.mubr.f32.mxu0 0.0
    %790 = vmatmul.mubr.f32.gmra.mrb[0].mxu0 %v151
    %v791 = vpop.f32.mrb[0].mxu0
    %v792 = vadd.f32 0.0, %v791
    %v793 = vpop.f32.mrb[0].mxu0
    %794 = vdwg.mxu0
    %797 = vrot.lane.b32.xlu0 %v787, 64
    %v798 = vpop.permute.xlu0 %797
    %799 = vrot.lane.b32.xlu0 %v792, 64
    %v800 = vpop.permute.xlu0 %799
    %v803 = vadd.f32 %v397, %v798
    %v804 = vadd.f32 %v403, %v800
    %v805 = vxor.u32 %v803, 2147483648
    %v806 = vxor.u32 %v804, 2147483648
    %v807 = vmul.f32 %v805, 1.442695
    %v808 = vpow.pop %v807
    %v809 = vmul.f32 %v806, 1.442695
    %v810 = vpow.pop %v809
    %v811 = vadd.f32 %v808, 1.0
    %v812 = vadd.f32 %v810, 1.0
    %v813 = vrcp.pop %v811
    %v814 = vmul.f32 1.0, %v813
    %v815 = vrcp.pop %v812
    %v816 = vmul.f32 1.0, %v815
    %v817 = vtanh.pop %v803
    %v818 = vtanh.pop %v804
    %821 = vrot.lane.b32.xlu0 %v607, 64
    %v822 = vpop.permute.xlu0 %821
    %823 = vrot.lane.b32.xlu0 %v608, 64
    %v824 = vpop.permute.xlu0 %823
    %v827 = vmul.f32 %v814, %v822
    %v828 = vmul.f32 %v816, %v824
    %831 = vrot.lane.b32.xlu0 %v817, 96
    %v832 = vpop.permute.xlu0 %831
    %833 = vrot.lane.b32.xlu0 %v818, 96
    %v834 = vpop.permute.xlu0 %833
    %v837 = vmul.f32 %v814, %v832
    %v838 = vmul.f32 %v816, %v834
    %841 = vrot.lane.b32.xlu0 %v837, 112
    %v842 = vpop.permute.xlu0 %841
    %843 = vrot.lane.b32.xlu0 %v838, 112
    %v844 = vpop.permute.xlu0 %843
    %v847 = vadd.f32 %v827, %v842
    %v848 = vadd.f32 %v828, %v844
    %v849 = vtanh.pop %v847
    %v850 = vtanh.pop %v848
    %853 = vrot.lane.b32.xlu0 %v849, 32
    %v854 = vpop.permute.xlu0 %853
    %855 = vrot.lane.b32.xlu0 %v850, 32
    %v856 = vpop.permute.xlu0 %855
    %v859 = vmul.f32 %v814, %v854
    %v860 = vmul.f32 %v816, %v856
    %863 = vrot.lane.b32.xlu0 %v859, 48
    %v864 = vpop.permute.xlu0 %863
    %865 = vrot.lane.b32.xlu0 %v860, 48
    %v866 = vpop.permute.xlu0 %865
    %vm869 = vcmask 261248
    %870 = vst.msk [vmem:[%s7] sm:$0xff] %vm869, %v864
    %871 = vst.msk [vmem:[%s7 + $0x8] sm:$0xff] %vm869, %v866
    %v872 = vld [vmem:[%s6 + $0x8] sm:$0xff]
    %v873 = vld [vmem:[%s6 + $0x18] sm:$0xff]
    %874 = vrot.lane.b32.xlu0 %v859, 32
    %v875 = vpop.permute.xlu0 %874
    %876 = vrot.lane.b32.xlu0 %v860, 32
    %v877 = vpop.permute.xlu0 %876
    %v878 = vsel %vm146, %v875, 0
    %v880 = vsel %vm146, %v877, 0
    %882 = vmatprep.subr.mxu0 0.0
    %883 = vmatpush1.msra.mxu0 %v872
    %884 = vmatprep.subr.mxu0 0.0
    %885 = vmatpush1.msra.mxu0 %v873
    %886 = vmatprep.subr.mxu0 0.0
    %887 = vmatpush1.msra.mxu0 0.0
    %888 = vmatprep.subr.mxu0 0.0
    %889 = vmatpush1.msra.mxu0 0.0
    %890 = vmatprep.subr.mxu0 0.0
    %891 = vmatpush1.msra.mxu0 0.0
    %892 = vmatprep.subr.mxu0 0.0
    %893 = vmatpush1.msra.mxu0 0.0
    %894 = vmatprep.subr.mxu0 0.0
    %895 = vmatpush1.msra.mxu0 0.0
    %896 = vmatprep.subr.mxu0 0.0
    %897 = vmatpush1.msra.mxu0 0.0
    %898 = vmatprep.subr.mxu0 0.0
    %899 = vmatpush1.msra.mxu0 0.0
    %900 = vmatprep.subr.mxu0 0.0
    %901 = vmatpush1.msra.mxu0 0.0
    %902 = vmatprep.subr.mxu0 0.0
    %903 = vmatpush1.msra.mxu0 0.0
    %904 = vmatprep.subr.mxu0 0.0
    %905 = vmatpush1.msra.mxu0 0.0
    %906 = vmatprep.subr.mxu0 0.0
    %907 = vmatpush1.msra.mxu0 0.0
    %908 = vmatprep.subr.mxu0 0.0
    %909 = vmatpush1.msra.mxu0 0.0
    %910 = vmatprep.subr.mxu0 0.0
    %911 = vmatpush1.msra.mxu0 0.0
    %912 = vmatprep.subr.mxu0 0.0
    %913 = vmatpush1.msra.mxu0 0.0
    %914 = vmatprep.subr.mxu0 0.0
    %915 = vmatpush1.msra.mxu0 0.0
    %916 = vmatprep.subr.mxu0 0.0
    %917 = vmatpush1.msra.mxu0 0.0
    %918 = vmatprep.subr.mxu0 0.0
    %919 = vmatpush1.msra.mxu0 0.0
    %920 = vmatprep.subr.mxu0 0.0
    %921 = vmatpush1.msra.mxu0 0.0
    %922 = vmatprep.subr.mxu0 0.0
    %923 = vmatpush1.msra.mxu0 0.0
    %924 = vmatprep.subr.mxu0 0.0
    %925 = vmatpush1.msra.mxu0 0.0
    %926 = vmatprep.subr.mxu0 0.0
    %927 = vmatpush1.msra.mxu0 0.0
    %928 = vmatprep.subr.mxu0 0.0
    %929 = vmatpush1.msra.mxu0 0.0
    %930 = vmatprep.subr.mxu0 0.0
    %931 = vmatpush1.msra.mxu0 0.0
    %932 = vmatprep.subr.mxu0 0.0
    %933 = vmatpush1.msra.mxu0 0.0
    %934 = vmatprep.subr.mxu0 0.0
    %935 = vmatpush1.msra.mxu0 0.0
    %936 = vmatprep.subr.mxu0 0.0
    %937 = vmatpush1.msra.mxu0 0.0
    %938 = vmatprep.subr.mxu0 0.0
    %939 = vmatpush1.msra.mxu0 0.0
    %940 = vmatprep.subr.mxu0 0.0
    %941 = vmatpush1.msra.mxu0 0.0
    %942 = vmatprep.subr.mxu0 0.0
    %943 = vmatpush1.msra.mxu0 0.0
    %944 = vmatprep.subr.mxu0 0.0
    %945 = vmatpush1.msra.mxu0 0.0
    %946 = vmatprep.mubr.f32.mxu0 0.0
    %947 = vmatmul.mubr.f32.gmra.mrb[0].mxu0 %v878
    %v948 = vpop.f32.mrb[0].mxu0
    %v949 = vadd.f32 0.0, %v948
    %v950 = vpop.f32.mrb[0].mxu0
    %951 = vmatprep.mubr.f32.mxu0 0.0
    %952 = vmatmul.mubr.f32.gmra.mrb[0].mxu0 %v880
    %v953 = vpop.f32.mrb[0].mxu0
    %v954 = vadd.f32 0.0, %v953
    %v955 = vpop.f32.mrb[0].mxu0
    %956 = vdwg.mxu0
    %957 = vmatprep.subr.mxu0 0.0
    %958 = vmatpush1.msra.mxu0 %v949
    %959 = vmatprep.subr.mxu0 0.0
    %960 = vmatpush1.msra.mxu0 %v954
    %961 = vmatprep.subr.mxu0 0.0
    %962 = vmatpush1.msra.mxu0 0.0
    %963 = vmatprep.subr.mxu0 0.0
    %964 = vmatpush1.msra.mxu0 0.0
    %965 = vmatprep.subr.mxu0 0.0
    %966 = vmatpush1.msra.mxu0 0.0
    %967 = vmatprep.subr.mxu0 0.0
    %968 = vmatpush1.msra.mxu0 0.0
    %969 = vmatprep.subr.mxu0 0.0
    %970 = vmatpush1.msra.mxu0 0.0
    %971 = vmatprep.subr.mxu0 0.0
    %972 = vmatpush1.msra.mxu0 0.0
    %973 = vmatprep.subr.mxu0 0.0
    %974 = vmatpush1.msra.mxu0 0.0
    %975 = vmatprep.subr.mxu0 0.0
    %976 = vmatpush1.msra.mxu0 0.0
    %977 = vmatprep.subr.mxu0 0.0
    %978 = vmatpush1.msra.mxu0 0.0
    %979 = vmatprep.subr.mxu0 0.0
    %980 = vmatpush1.msra.mxu0 0.0
    %981 = vmatprep.subr.mxu0 0.0
    %982 = vmatpush1.msra.mxu0 0.0
    %983 = vmatprep.subr.mxu0 0.0
    %984 = vmatpush1.msra.mxu0 0.0
    %985 = vmatprep.subr.mxu0 0.0
    %986 = vmatpush1.msra.mxu0 0.0
    %987 = vmatprep.subr.mxu0 0.0
    %988 = vmatpush1.msra.mxu0 0.0
    %989 = vmatprep.subr.mxu0 0.0
    %990 = vmatpush1.msra.mxu0 0.0
    %991 = vmatprep.subr.mxu0 0.0
    %992 = vmatpush1.msra.mxu0 0.0
    %993 = vmatprep.subr.mxu0 0.0
    %994 = vmatpush1.msra.mxu0 0.0
    %995 = vmatprep.subr.mxu0 0.0
    %996 = vmatpush1.msra.mxu0 0.0
    %997 = vmatprep.subr.mxu0 0.0
    %998 = vmatpush1.msra.mxu0 0.0
    %999 = vmatprep.subr.mxu0 0.0
    %1000 = vmatpush1.msra.mxu0 0.0
    %1001 = vmatprep.subr.mxu0 0.0
    %1002 = vmatpush1.msra.mxu0 0.0
    %1003 = vmatprep.subr.mxu0 0.0
    %1004 = vmatpush1.msra.mxu0 0.0
    %1005 = vmatprep.subr.mxu0 0.0
    %1006 = vmatpush1.msra.mxu0 0.0
    %1007 = vmatprep.subr.mxu0 0.0
    %1008 = vmatpush1.msra.mxu0 0.0
    %1009 = vmatprep.subr.mxu0 0.0
    %1010 = vmatpush1.msra.mxu0 0.0
    %1011 = vmatprep.subr.mxu0 0.0
    %1012 = vmatpush1.msra.mxu0 0.0
    %1013 = vmatprep.subr.mxu0 0.0
    %1014 = vmatpush1.msra.mxu0 0.0
    %1015 = vmatprep.subr.mxu0 0.0
    %1016 = vmatpush1.msra.mxu0 0.0
    %1017 = vmatprep.subr.mxu0 0.0
    %1018 = vmatpush1.msra.mxu0 0.0
    %1019 = vmatprep.subr.mxu0 0.0
    %1020 = vmatpush1.msra.mxu0 0.0
    %1021 = vmatprep.mubr.f32.mxu0 0.0
    %1022 = vmatmul.mubr.f32.gmra.mrb[0].mxu0 %v148
    %v1023 = vpop.f32.mrb[0].mxu0
    %v1024 = vadd.f32 0.0, %v1023
    %v1025 = vpop.f32.mrb[0].mxu0
    %1026 = vmatprep.mubr.f32.mxu0 0.0
    %1027 = vmatmul.mubr.f32.gmra.mrb[0].mxu0 %v151
    %v1028 = vpop.f32.mrb[0].mxu0
    %v1029 = vadd.f32 0.0, %v1028
    %v1030 = vpop.f32.mrb[0].mxu0
    %1031 = vdwg.mxu0
    %v1032 = vadd.f32 %v399, %v1024
    %v1033 = vadd.f32 %v405, %v1029
    %v1034 = vxor.u32 %v1032, 2147483648
    %v1035 = vxor.u32 %v1033, 2147483648
    %v1036 = vmul.f32 %v1034, 1.442695
    %v1037 = vpow.pop %v1036
    %v1038 = vmul.f32 %v1035, 1.442695
    %v1039 = vpow.pop %v1038
    %v1040 = vadd.f32 %v1037, 1.0
    %v1041 = vadd.f32 %v1039, 1.0
    %v1042 = vrcp.pop %v1040
    %v1043 = vmul.f32 1.0, %v1042
    %v1044 = vrcp.pop %v1041
    %v1045 = vmul.f32 1.0, %v1044
    %v1046 = vtanh.pop %v1032
    %v1047 = vtanh.pop %v1033
    %1050 = vrot.lane.b32.xlu0 %v847, 64
    %v1051 = vpop.permute.xlu0 %1050
    %1052 = vrot.lane.b32.xlu0 %v848, 64
    %v1053 = vpop.permute.xlu0 %1052
    %v1056 = vmul.f32 %v1043, %v1051
    %v1057 = vmul.f32 %v1045, %v1053
    %1060 = vrot.lane.b32.xlu0 %v1046, 96
    %v1061 = vpop.permute.xlu0 %1060
    %1062 = vrot.lane.b32.xlu0 %v1047, 96
    %v1063 = vpop.permute.xlu0 %1062
    %v1066 = vmul.f32 %v1043, %v1061
    %v1067 = vmul.f32 %v1045, %v1063
    %1070 = vrot.lane.b32.xlu0 %v1066, 112
    %v1071 = vpop.permute.xlu0 %1070
    %1072 = vrot.lane.b32.xlu0 %v1067, 112
    %v1073 = vpop.permute.xlu0 %1072
    %v1076 = vadd.f32 %v1056, %v1071
    %v1077 = vadd.f32 %v1057, %v1073
    %v1078 = vtanh.pop %v1076
    %v1079 = vtanh.pop %v1077
    %1082 = vrot.lane.b32.xlu0 %v1078, 32
    %v1083 = vpop.permute.xlu0 %1082
    %1084 = vrot.lane.b32.xlu0 %v1079, 32
    %v1085 = vpop.permute.xlu0 %1084
    %v1088 = vmul.f32 %v1043, %v1083
    %v1089 = vmul.f32 %v1045, %v1085
    %vm1090 = vcmask 392448
    %1091 = vst.msk [vmem:[%s7] sm:$0xff] %vm1090, %v1088
    %1092 = vst.msk [vmem:[%s7 + $0x8] sm:$0xff] %vm1090, %v1089
    %v1093 = vld [vmem:[%s6 + $0x8] sm:$0xff]
    %v1094 = vld [vmem:[%s6 + $0x18] sm:$0xff]
    %1097 = vrot.lane.b32.xlu0 %v1088, 96
    %v1098 = vpop.permute.xlu0 %1097
    %1099 = vrot.lane.b32.xlu0 %v1089, 96
    %v1100 = vpop.permute.xlu0 %1099
    %1103 = vrot.lane.b32.xlu0 %v1093, 64
    %v1104 = vpop.permute.xlu0 %1103
    %1105 = vrot.lane.b32.xlu0 %v1094, 64
    %v1106 = vpop.permute.xlu0 %1105
    %v1109 = vsel %vm146, %v1098, 0
    %v1111 = vsel %vm146, %v1100, 0
    %1113 = vmatprep.subr.mxu0 0.0
    %1114 = vmatpush1.msra.mxu0 %v1104
    %1115 = vmatprep.subr.mxu0 0.0
    %1116 = vmatpush1.msra.mxu0 %v1106
    %1117 = vmatprep.subr.mxu0 0.0
    %1118 = vmatpush1.msra.mxu0 0.0
    %1119 = vmatprep.subr.mxu0 0.0
    %1120 = vmatpush1.msra.mxu0 0.0
    %1121 = vmatprep.subr.mxu0 0.0
    %1122 = vmatpush1.msra.mxu0 0.0
    %1123 = vmatprep.subr.mxu0 0.0
    %1124 = vmatpush1.msra.mxu0 0.0
    %1125 = vmatprep.subr.mxu0 0.0
    %1126 = vmatpush1.msra.mxu0 0.0
    %1127 = vmatprep.subr.mxu0 0.0
    %1128 = vmatpush1.msra.mxu0 0.0
    %1129 = vmatprep.subr.mxu0 0.0
    %1130 = vmatpush1.msra.mxu0 0.0
    %1131 = vmatprep.subr.mxu0 0.0
    %1132 = vmatpush1.msra.mxu0 0.0
    %1133 = vmatprep.subr.mxu0 0.0
    %1134 = vmatpush1.msra.mxu0 0.0
    %1135 = vmatprep.subr.mxu0 0.0
    %1136 = vmatpush1.msra.mxu0 0.0
    %1137 = vmatprep.subr.mxu0 0.0
    %1138 = vmatpush1.msra.mxu0 0.0
    %1139 = vmatprep.subr.mxu0 0.0
    %1140 = vmatpush1.msra.mxu0 0.0
    %1141 = vmatprep.subr.mxu0 0.0
    %1142 = vmatpush1.msra.mxu0 0.0
    %1143 = vmatprep.subr.mxu0 0.0
    %1144 = vmatpush1.msra.mxu0 0.0
    %1145 = vmatprep.subr.mxu0 0.0
    %1146 = vmatpush1.msra.mxu0 0.0
    %1147 = vmatprep.subr.mxu0 0.0
    %1148 = vmatpush1.msra.mxu0 0.0
    %1149 = vmatprep.subr.mxu0 0.0
    %1150 = vmatpush1.msra.mxu0 0.0
    %1151 = vmatprep.subr.mxu0 0.0
    %1152 = vmatpush1.msra.mxu0 0.0
    %1153 = vmatprep.subr.mxu0 0.0
    %1154 = vmatpush1.msra.mxu0 0.0
    %1155 = vmatprep.subr.mxu0 0.0
    %1156 = vmatpush1.msra.mxu0 0.0
    %1157 = vmatprep.subr.mxu0 0.0
    %1158 = vmatpush1.msra.mxu0 0.0
    %1159 = vmatprep.subr.mxu0 0.0
    %1160 = vmatpush1.msra.mxu0 0.0
    %1161 = vmatprep.subr.mxu0 0.0
    %1162 = vmatpush1.msra.mxu0 0.0
    %1163 = vmatprep.subr.mxu0 0.0
    %1164 = vmatpush1.msra.mxu0 0.0
    %1165 = vmatprep.subr.mxu0 0.0
    %1166 = vmatpush1.msra.mxu0 0.0
    %1167 = vmatprep.subr.mxu0 0.0
    %1168 = vmatpush1.msra.mxu0 0.0
    %1169 = vmatprep.subr.mxu0 0.0
    %1170 = vmatpush1.msra.mxu0 0.0
    %1171 = vmatprep.subr.mxu0 0.0
    %1172 = vmatpush1.msra.mxu0 0.0
    %1173 = vmatprep.subr.mxu0 0.0
    %1174 = vmatpush1.msra.mxu0 0.0
    %1175 = vmatprep.subr.mxu0 0.0
    %1176 = vmatpush1.msra.mxu0 0.0
    %1177 = vmatprep.mubr.f32.mxu0 0.0
    %1178 = vmatmul.mubr.f32.gmra.mrb[0].mxu0 %v1109
    %v1179 = vpop.f32.mrb[0].mxu0
    %v1180 = vadd.f32 0.0, %v1179
    %v1181 = vpop.f32.mrb[0].mxu0
    %1182 = vmatprep.mubr.f32.mxu0 0.0
    %1183 = vmatmul.mubr.f32.gmra.mrb[0].mxu0 %v1111
    %v1184 = vpop.f32.mrb[0].mxu0
    %v1185 = vadd.f32 0.0, %v1184
    %v1186 = vpop.f32.mrb[0].mxu0
    %1187 = vdwg.mxu0
    %1188 = vmatprep.subr.mxu0 0.0
    %1189 = vmatpush1.msra.mxu0 %v1180
    %1190 = vmatprep.subr.mxu0 0.0
    %1191 = vmatpush1.msra.mxu0 %v1185
    %1192 = vmatprep.subr.mxu0 0.0
    %1193 = vmatpush1.msra.mxu0 0.0
    %1194 = vmatprep.subr.mxu0 0.0
    %1195 = vmatpush1.msra.mxu0 0.0
    %1196 = vmatprep.subr.mxu0 0.0
    %1197 = vmatpush1.msra.mxu0 0.0
    %1198 = vmatprep.subr.mxu0 0.0
    %1199 = vmatpush1.msra.mxu0 0.0
    %1200 = vmatprep.subr.mxu0 0.0
    %1201 = vmatpush1.msra.mxu0 0.0
    %1202 = vmatprep.subr.mxu0 0.0
    %1203 = vmatpush1.msra.mxu0 0.0
    %1204 = vmatprep.subr.mxu0 0.0
    %1205 = vmatpush1.msra.mxu0 0.0
    %1206 = vmatprep.subr.mxu0 0.0
    %1207 = vmatpush1.msra.mxu0 0.0
    %1208 = vmatprep.subr.mxu0 0.0
    %1209 = vmatpush1.msra.mxu0 0.0
    %1210 = vmatprep.subr.mxu0 0.0
    %1211 = vmatpush1.msra.mxu0 0.0
    %1212 = vmatprep.subr.mxu0 0.0
    %1213 = vmatpush1.msra.mxu0 0.0
    %1214 = vmatprep.subr.mxu0 0.0
    %1215 = vmatpush1.msra.mxu0 0.0
    %1216 = vmatprep.subr.mxu0 0.0
    %1217 = vmatpush1.msra.mxu0 0.0
    %1218 = vmatprep.subr.mxu0 0.0
    %1219 = vmatpush1.msra.mxu0 0.0
    %1220 = vmatprep.subr.mxu0 0.0
    %1221 = vmatpush1.msra.mxu0 0.0
    %1222 = vmatprep.subr.mxu0 0.0
    %1223 = vmatpush1.msra.mxu0 0.0
    %1224 = vmatprep.subr.mxu0 0.0
    %1225 = vmatpush1.msra.mxu0 0.0
    %1226 = vmatprep.subr.mxu0 0.0
    %1227 = vmatpush1.msra.mxu0 0.0
    %1228 = vmatprep.subr.mxu0 0.0
    %1229 = vmatpush1.msra.mxu0 0.0
    %1230 = vmatprep.subr.mxu0 0.0
    %1231 = vmatpush1.msra.mxu0 0.0
    %1232 = vmatprep.subr.mxu0 0.0
    %1233 = vmatpush1.msra.mxu0 0.0
    %1234 = vmatprep.subr.mxu0 0.0
    %1235 = vmatpush1.msra.mxu0 0.0
    %1236 = vmatprep.subr.mxu0 0.0
    %1237 = vmatpush1.msra.mxu0 0.0
    %1238 = vmatprep.subr.mxu0 0.0
    %1239 = vmatpush1.msra.mxu0 0.0
    %1240 = vmatprep.subr.mxu0 0.0
    %1241 = vmatpush1.msra.mxu0 0.0
    %1242 = vmatprep.subr.mxu0 0.0
    %1243 = vmatpush1.msra.mxu0 0.0
    %1244 = vmatprep.subr.mxu0 0.0
    %1245 = vmatpush1.msra.mxu0 0.0
    %1246 = vmatprep.subr.mxu0 0.0
    %1247 = vmatpush1.msra.mxu0 0.0
    %1248 = vmatprep.subr.mxu0 0.0
    %1249 = vmatpush1.msra.mxu0 0.0
    %1250 = vmatprep.subr.mxu0 0.0
    %1251 = vmatpush1.msra.mxu0 0.0
    %1252 = vmatprep.mubr.f32.mxu0 0.0
    %1253 = vmatmul.mubr.f32.gmra.mrb[0].mxu0 %v148
    %v1254 = vpop.f32.mrb[0].mxu0
    %v1255 = vadd.f32 0.0, %v1254
    %v1256 = vpop.f32.mrb[0].mxu0
    %1257 = vmatprep.mubr.f32.mxu0 0.0
    %1258 = vmatmul.mubr.f32.gmra.mrb[0].mxu0 %v151
    %v1259 = vpop.f32.mrb[0].mxu0
    %v1260 = vadd.f32 0.0, %v1259
    %v1261 = vpop.f32.mrb[0].mxu0
    %1262 = vdwg.mxu0
    %1265 = vrot.lane.b32.xlu0 %v1255, 64
    %v1266 = vpop.permute.xlu0 %1265
    %1267 = vrot.lane.b32.xlu0 %v1260, 64
    %v1268 = vpop.permute.xlu0 %1267
    %v1271 = vadd.f32 %v399, %v1266
    %v1272 = vadd.f32 %v405, %v1268
    %v1273 = vxor.u32 %v1271, 2147483648
    %v1274 = vxor.u32 %v1272, 2147483648
    %v1275 = vmul.f32 %v1273, 1.442695
    %v1276 = vpow.pop %v1275
    %v1277 = vmul.f32 %v1274, 1.442695
    %v1278 = vpow.pop %v1277
    %v1279 = vadd.f32 %v1276, 1.0
    %v1280 = vadd.f32 %v1278, 1.0
    %v1281 = vrcp.pop %v1279
    %v1282 = vmul.f32 1.0, %v1281
    %v1283 = vrcp.pop %v1280
    %v1284 = vmul.f32 1.0, %v1283
    %v1285 = vtanh.pop %v1271
    %v1286 = vtanh.pop %v1272
    %1289 = vrot.lane.b32.xlu0 %v1076, 64
    %v1290 = vpop.permute.xlu0 %1289
    %1291 = vrot.lane.b32.xlu0 %v1077, 64
    %v1292 = vpop.permute.xlu0 %1291
    %v1295 = vmul.f32 %v1282, %v1290
    %v1296 = vmul.f32 %v1284, %v1292
    %1299 = vrot.lane.b32.xlu0 %v1285, 96
    %v1300 = vpop.permute.xlu0 %1299
    %1301 = vrot.lane.b32.xlu0 %v1286, 96
    %v1302 = vpop.permute.xlu0 %1301
    %v1305 = vmul.f32 %v1282, %v1300
    %v1306 = vmul.f32 %v1284, %v1302
    %1309 = vrot.lane.b32.xlu0 %v1305, 112
    %v1310 = vpop.permute.xlu0 %1309
    %1311 = vrot.lane.b32.xlu0 %v1306, 112
    %v1312 = vpop.permute.xlu0 %1311
    %v1315 = vadd.f32 %v1295, %v1310
    %v1316 = vadd.f32 %v1296, %v1312
    %v1317 = vtanh.pop %v1315
    %v1318 = vtanh.pop %v1316
    %1321 = vrot.lane.b32.xlu0 %v1317, 32
    %v1322 = vpop.permute.xlu0 %1321
    %1323 = vrot.lane.b32.xlu0 %v1318, 32
    %v1324 = vpop.permute.xlu0 %1323
    %v1327 = vmul.f32 %v1282, %v1322
    %v1328 = vmul.f32 %v1284, %v1324
    %1331 = vrot.lane.b32.xlu0 %v1327, 80
    %v1332 = vpop.permute.xlu0 %1331
    %1333 = vrot.lane.b32.xlu0 %v1328, 80
    %v1334 = vpop.permute.xlu0 %1333
    %vm1337 = vcmask 523648
    %1338 = vst.msk [vmem:[%s7] sm:$0xff] %vm1337, %v1332
    %1339 = vst.msk [vmem:[%s7 + $0x8] sm:$0xff] %vm1337, %v1334
    %1340 = vrot.lane.b32.xlu0 %v1327, 32
    %v1341 = vpop.permute.xlu0 %1340
    %1342 = vrot.lane.b32.xlu0 %v1328, 32
    %v1343 = vpop.permute.xlu0 %1342
    %1346 = vst.msk [vmem:[#allocation5] sm:$0xff] %vm146, %v1341
    %1347 = vst.msk [vmem:[#allocation5 + $0x8] sm:$0xff] %vm146, %v1343
    %1350 = vrot.lane.b32.xlu0 %v1315, 64
    %v1351 = vpop.permute.xlu0 %1350
    %1352 = vrot.lane.b32.xlu0 %v1316, 64
    %v1353 = vpop.permute.xlu0 %1352
    %1356 = vst.msk [vmem:[#allocation6] sm:$0xff] %vm146, %v1351
    %1357 = vst.msk [vmem:[#allocation6 + $0x8] sm:$0xff] %vm146, %v1353
    // Predicated region
    $region34: #{decoder_forward.1} parent=1 // pred_check
      _
    $region35: #{decoder_forward.1} parent=1 // pred_check_branch
      %1359 = sbr.rel (0) target = $region37
    $region36: #{decoder_forward.1} parent=1 // pred_region
      _
    $region37: #{decoder_forward.1} parent=1 // pred_fallthru
      _
    // Predicated region
    $region38: #{decoder_forward.1} parent=1 // pred_check
      _
    $region39: #{decoder_forward.1} parent=1 // pred_check_branch
      %1361 = sbr.rel (0) target = $region41
    $region40: #{decoder_forward.1} parent=1 // pred_region
      %s1363 = ssub.s32 256, 256
      %1364 = vsyncadd [#allocation4], %s1363
      %s1365 = sshll.u32 [#allocation5], 4
      %s1366 = int_to_ptr.vmem [resolvable:$true] %s1365
      %1371 = dma.vmem_to_hbm [thread:$0]  %s1366, 256, %s8, [#allocation4], 128, 128, 8
    $region41: #{decoder_forward.1} parent=1 // pred_fallthru
      _
    // Predicated region
    $region42: #{decoder_forward.1} parent=1 // pred_check
      _
    $region43: #{decoder_forward.1} parent=1 // pred_check_branch
      %1373 = sbr.rel (0) target = $region45
    $region44: #{decoder_forward.1} parent=1 // pred_region
      %s1375 = ssub.s32 256, 256
      %1376 = vsyncadd [#allocation7], %s1375
      %s1377 = sshll.u32 [#allocation6], 4
      %s1378 = int_to_ptr.vmem [resolvable:$true] %s1377
      %1383 = dma.vmem_to_hbm [thread:$0]  %s1378, 256, %s9, [#allocation7], 128, 128, 8
    $region45: #{decoder_forward.1} parent=1 // pred_fallthru
      _
    // Predicated region
    $region46: #{decoder_forward.1} parent=1 // pred_check
      _
    $region47: #{decoder_forward.1} parent=1 // pred_check_branch
      %1385 = sbr.rel (0) target = $region49
    $region48: #{decoder_forward.1} parent=1 // pred_region
      _
    $region49: #{decoder_forward.1} parent=1 // pred_fallthru
      _
    // Predicated region
    $region50: #{decoder_forward.1} parent=1 // pred_check
      _
    $region51: #{decoder_forward.1} parent=1 // pred_check_branch
      %1387 = sbr.rel (0) target = $region53
    $region52: #{decoder_forward.1} parent=1 // pred_region
      %1388 = dma.done [#allocation4], 256
    $region53: #{decoder_forward.1} parent=1 // pred_fallthru
      _
    // Predicated region
    $region54: #{decoder_forward.1} parent=1 // pred_check
      _
    $region55: #{decoder_forward.1} parent=1 // pred_check_branch
      %1390 = sbr.rel (0) target = $region57
    $region56: #{decoder_forward.1} parent=1 // pred_region
      %1391 = dma.done [#allocation7], 256
    $region57: #{decoder_forward.1} parent=1 // pred_fallthru
      _
    %1392 = vsyncpa [#allocation3], 1
    %1393 = vsyncpa [#allocation4], 1
    %1394 = vsyncpa [#allocation7], 1

</llo_original>
